<compile_context>
chip_gen: v7x
topology: tpu7x:2x2x1
jax: 0.10.0
libtpu: 0.0.40
codegen_flags: <defaults>
</compile_context>

<pallas_src>
import functools

import numpy as np
import jax
import jax.numpy as jnp
from jax import lax
from jax.experimental import pallas as pl
from jax.experimental.pallas import tpu as pltpu


# ---------------------------------------------------------------------------
# Filter construction (mirrors Downsample.__init__ exactly)
# ---------------------------------------------------------------------------
_BINOMIAL = {
    1: np.array([1.0]),
    2: np.array([1.0, 1.0]),
    3: np.array([1.0, 2.0, 1.0]),
    4: np.array([1.0, 3.0, 3.0, 1.0]),
    5: np.array([1.0, 4.0, 6.0, 4.0, 1.0]),
    6: np.array([1.0, 5.0, 10.0, 10.0, 5.0, 1.0]),
    7: np.array([1.0, 6.0, 15.0, 20.0, 15.0, 6.0, 1.0]),
}

# torch ReflectionPad2d == jnp 'reflect', ReplicationPad2d == 'edge', ZeroPad2d == 'constant'
_PAD_MODE = {'refl': 'reflect', 'reflect': 'reflect',
             'repl': 'edge', 'replicate': 'edge',
             'zero': 'constant'}

_LANE = 128
_SUBLANE = 8


def _norm_taps(filt_size):
    """Normalized 1-D binomial taps; outer(taps, taps) == the module's `filt`."""
    a = _BINOMIAL[filt_size].astype(np.float64)
    a = a / a.sum()
    return tuple(float(t) for t in a)


def make_filt(filt_size, channels):
    """The registered buffer `filt`: shape (C, 1, K, K), normalized binomial blur."""
    a = _BINOMIAL[filt_size]
    f = a[:, None] * a[None, :]
    f = f / f.sum()
    return np.broadcast_to(f[None, None], (channels, 1, filt_size, filt_size)).astype(np.float32)


def _boundary_filter_matrix(size_out, size_in, filt_size, stride, pad_l, mode):
    """Aw[j, w]: strided 1-D blur with the padding folded in (boundary-aware)."""
    taps = _norm_taps(filt_size)
    A = np.zeros((size_out, size_in), np.float32)
    for j in range(size_out):
        for m in range(filt_size):
            c = j * stride + m - pad_l          # column in UNPADDED coords
            if mode == 'reflect':
                if c < 0:
                    c = -c
                elif c >= size_in:
                    c = 2 * (size_in - 1) - c
            elif mode == 'edge':
                c = min(max(c, 0), size_in - 1)
            else:                               # zero padding: out-of-range taps vanish
                if c < 0 or c >= size_in:
                    continue
            A[j, c] += taps[m]
    return A


# ---------------------------------------------------------------------------
# VMEM planning (review: account for intermediates, use get_tpu_info, >= 4 steps)
# ---------------------------------------------------------------------------
def _round_up(v, m):
    return (v + m - 1) // m * m


def _vmem_capacity_bytes():
    try:
        cap = getattr(pltpu.get_tpu_info(), "vmem_capacity_bytes", None)
        if cap:
            return int(cap)
    except Exception:
        pass
    return 64 * 1024 * 1024          # conservative fallback (v7x per-core physical VMEM)


def _plan_blocks(B, H, W, Ho, Wo, itemsize):
    """Pick the lane-block size bb and an explicit scoped-VMEM limit.

    Counts the double-buffered input/output blocks, the resident Aw operand and the
    per-row f32 intermediates of the in-kernel loop (y: (W, bb), z: (Wo, bb))."""
    cap = _vmem_capacity_bytes()
    budget = int(cap * 0.45)                      # pipeline footprint target, with headroom

    W8, Wo8 = _round_up(W, _SUBLANE), _round_up(Wo, _SUBLANE)
    per_lane = (2 * H * W8 + 2 * Ho * Wo8) * itemsize + (2 * W8 + Wo8) * 4
    aw_bytes = 2 * Wo8 * _round_up(W, _LANE) * 4

    if B <= _LANE:
        bb = B                                    # lane block must be a 128-multiple or full dim
    else:
        nb = pl.cdiv(B, _LANE)
        k_budget = max(1, (budget - aw_bytes) // (per_lane * _LANE))
        # Keep >= 4 grid steps when possible (double-buffering overlap; 2 blocks/core on v7x).
        k_steps = max(1, nb // 4)
        bb = _LANE * max(1, min(nb, k_budget, k_steps))

    used = per_lane * bb + aw_bytes + (1 << 20)   # +1 MiB slack for Mosaic internals
    vmem_limit = int(min(int(cap * 0.95), max(used * 5 // 4, 32 * 1024 * 1024)))
    return bb, vmem_limit


# ---------------------------------------------------------------------------
# Pallas kernel
#   aw_ref: (Wo, W) f32   x_ref: (H, W, bb)   o_ref: (Ho, Wo, bb)
#   B = N*C on the lane axis -> lane-dense loads/stores, wide MXU N dim.
# ---------------------------------------------------------------------------
def _blurpool_kernel(aw_ref, x_ref, o_ref, *, taps, stride, pad_l, pad_mode, H, Ho):
    aw = aw_ref[...]                                        # (Wo, W) f32, stays resident

    def row_body(o, carry):
        # --- H contraction: K taps with the padding folded in; f32 accumulation (VPU).
        y = None
        for k, tap in enumerate(taps):                      # static K-tap unroll
            r = o * stride + (k - pad_l)                    # row index in UNPADDED coords
            if pad_mode == 'reflect':
                ridx = jnp.where(r < 0, -r, jnp.where(r >= H, 2 * (H - 1) - r, r))
                row = x_ref[ridx].astype(jnp.float32) * tap
            elif pad_mode == 'edge':
                ridx = jnp.clip(r, 0, H - 1)
                row = x_ref[ridx].astype(jnp.float32) * tap
            else:                                           # zero padding
                ridx = jnp.clip(r, 0, H - 1)
                coeff = jnp.where((r >= 0) & (r < H), tap, 0.0)
                row = x_ref[ridx].astype(jnp.float32) * coeff
            y = row if y is None else y + row               # (W, bb) f32

        # --- W contraction on the MXU: boundary-aware Aw folds the W padding.
        z = jnp.dot(aw, y, preferred_element_type=jnp.float32)   # (Wo, bb) f32
        o_ref[o] = z.astype(o_ref.dtype)
        return carry

    lax.fori_loop(0, Ho, row_body, None, unroll=Ho <= 8)


# ---------------------------------------------------------------------------
# Wrapper (layout plumbing, pallas_call)
# ---------------------------------------------------------------------------
def downsample(x, *, filt_size=3, stride=2, pad_type='reflect', pad_off=0):
    if pad_type not in _PAD_MODE:
        raise ValueError('Pad type [%s] not recognized' % pad_type)
    mode = _PAD_MODE[pad_type]
    N, C, H, W = x.shape

    pad_l = int((filt_size - 1) / 2) + pad_off
    pad_r = int(np.ceil((filt_size - 1) / 2)) + pad_off

    if filt_size == 1:
        # Module's shortcut path: pure strided slicing, nothing to compute.
        if pad_off == 0:
            return x[:, :, ::stride, ::stride]
        pads = ((0, 0), (0, 0), (pad_l, pad_r), (pad_l, pad_r))
        return jnp.pad(x, pads, mode=mode)[:, :, ::stride, ::stride]

    Hp, Wp = H + pad_l + pad_r, W + pad_l + pad_r
    Ho = (Hp - filt_size) // stride + 1
    Wo = (Wp - filt_size) // stride + 1
    B = N * C

    # Layout plumbing: B = N*C on the minor (lane) axis.  No jnp.pad round-trip — the
    # padding is folded into the kernel operators.
    xt = x.transpose(2, 3, 0, 1).reshape(H, W, B)           # (H, W, B)

    taps = _norm_taps(filt_size)
    aw = jnp.asarray(_boundary_filter_matrix(Wo, W, filt_size, stride, pad_l, mode))

    bb, vmem_limit = _plan_blocks(B, H, W, Ho, Wo, x.dtype.itemsize)
    grid = (pl.cdiv(B, bb),)

    kernel = functools.partial(_blurpool_kernel, taps=taps, stride=stride,
                               pad_l=pad_l, pad_mode=mode, H=H, Ho=Ho)

    flops = int(B * Ho * (W * (2 * filt_size - 1) + 2 * Wo * W))
    bytes_accessed = int(B * (H * W + Ho * Wo) * x.dtype.itemsize + Wo * W * 4)

    out = pl.pallas_call(
        kernel,
        out_shape=jax.ShapeDtypeStruct((Ho, Wo, B), x.dtype),
        grid=grid,
        in_specs=[
            pl.BlockSpec((Wo, W), lambda i: (0, 0)),          # Aw: constant block, resident
            pl.BlockSpec((H, W, bb), lambda i: (0, 0, i)),    # one contiguous lane-slab per step
        ],
        out_specs=pl.BlockSpec((Ho, Wo, bb), lambda i: (0, 0, i)),
        compiler_params=pltpu.CompilerParams(
            dimension_semantics=("parallel",),
            vmem_limit_bytes=vmem_limit),
        cost_estimate=pl.CostEstimate(flops=flops, transcendentals=0,
                                      bytes_accessed=bytes_accessed),
    )(aw, xt)

    # Back to NCHW.
    return out.reshape(Ho, Wo, N, C).transpose(2, 3, 0, 1)


# ---------------------------------------------------------------------------
# Pure-JAX reference (mirrors F.conv2d(self.pad(x), self.filt, stride, groups=C))
# ---------------------------------------------------------------------------
def downsample_ref(x, *, filt_size=3, stride=2, pad_type='reflect', pad_off=0):
    N, C, H, W = x.shape
    pad_l = int((filt_size - 1) / 2) + pad_off
    pad_r = int(np.ceil((filt_size - 1) / 2)) + pad_off
    mode = _PAD_MODE[pad_type]
    pads = ((0, 0), (0, 0), (pad_l, pad_r), (pad_l, pad_r))
    if filt_size == 1:
        if pad_off == 0:
            return x[:, :, ::stride, ::stride]
        return jnp.pad(x, pads, mode=mode)[:, :, ::stride, ::stride]
    xp = jnp.pad(x, pads, mode=mode)
    filt = jnp.asarray(make_filt(filt_size, C))              # (C, 1, K, K)
    return lax.conv_general_dilated(
        xp, filt, window_strides=(stride, stride), padding='VALID',
        dimension_numbers=('NCHW', 'OIHW', 'NCHW'), feature_group_count=C)


if __name__ == "__main__":
    key = jax.random.PRNGKey(0)
    ks = jax.random.split(key, 4)

    cases = [
        # (input shape, kwargs, expected output shape)
        ((2, 4, 16, 16), dict(), (2, 4, 8, 8)),                                # default reflect/3/2
        ((2, 128, 9, 9), dict(), (2, 128, 5, 5)),                              # full lane blocks, odd spatial
        ((2, 4, 16, 16), dict(pad_type='zero'), (2, 4, 8, 8)),                 # zero padding folded in
        ((1, 8, 12, 12), dict(filt_size=5, pad_type='replicate'), (1, 8, 6, 6)),  # bigger filter, replicate
    ]
    for k, (shape, kw, expect) in zip(ks, cases):
        x = jax.random.normal(k, shape, dtype=jnp.float32)
        out = jax.block_until_ready(downsample(x, **kw))
        ref = jax.block_until_ready(downsample_ref(x, **kw))
        assert out.shape == expect, (out.shape, expect, kw)
        assert np.allclose(np.asarray(out), np.asarray(ref), atol=1e-5, rtol=1e-5), kw

    print("KERNEL_OK")
</pallas_src>

<mosaic_0001>
module attributes {stable_mosaic.version = 11 : i64} {
  func.func @_blurpool_kernel(%arg0: i32, %arg1: memref<8x16xf32, #tpu.memory_space<vmem>>, %arg2: memref<16x16x8xf32, #tpu.memory_space<vmem>>, %arg3: memref<8x8x8xf32, #tpu.memory_space<vmem>>) attributes {dimension_semantics = [#tpu.dimension_semantics<parallel>], iteration_bounds = array<i64: 1>, scalar_prefetch = 0 : i64, scratch_operands = 0 : i64, tpu.core_type = #tpu.core_type<tc>, window_params = [{pipeline_mode = #tpu.pipeline_mode<synchronous>, transform_indices = @transform_0, window_bounds = array<i64: 8, 16>}, {transform_indices = @transform_1, window_bounds = array<i64: 16, 16, 8>}, {transform_indices = @transform_2, window_bounds = array<i64: 8, 8, 8>}]} {
    %c0 = arith.constant 0 : index
    %c0_0 = arith.constant 0 : index
    %0 = vector.load %arg1[%c0, %c0_0] : memref<8x16xf32, #tpu.memory_space<vmem>>, vector<8x16xf32>
    %c0_i32 = arith.constant 0 : i32
    %c2_i32 = arith.constant 2 : i32
    %1 = arith.muli %c0_i32, %c2_i32 : i32
    %c-1_i32 = arith.constant -1 : i32
    %2 = arith.addi %1, %c-1_i32 : i32
    %c0_i32_1 = arith.constant 0 : i32
    %3 = arith.cmpi slt, %2, %c0_i32_1 : i32
    %c0_i32_2 = arith.constant 0 : i32
    %4 = arith.subi %c0_i32_2, %2 : i32
    %c16_i32 = arith.constant 16 : i32
    %5 = arith.cmpi sge, %2, %c16_i32 : i32
    %c30_i32 = arith.constant 30 : i32
    %6 = arith.subi %c30_i32, %2 : i32
    %7 = arith.select %5, %6, %2 : i32
    %8 = arith.select %3, %4, %7 : i32
    %9 = arith.index_cast %8 : i32 to index
    %c0_3 = arith.constant 0 : index
    %c0_4 = arith.constant 0 : index
    %10 = vector.load %arg2[%9, %c0_3, %c0_4] : memref<16x16x8xf32, #tpu.memory_space<vmem>>, vector<1x16x8xf32>
    %11 = vector.shape_cast %10 : vector<1x16x8xf32> to vector<16x8xf32>
    %cst = arith.constant 2.500000e-01 : f32
    %12 = vector.broadcast %cst : f32 to vector<16x8xf32>
    %13 = arith.mulf %11, %12 : vector<16x8xf32>
    %c2_i32_5 = arith.constant 2 : i32
    %14 = arith.muli %c0_i32, %c2_i32_5 : i32
    %c0_i32_6 = arith.constant 0 : i32
    %15 = arith.addi %14, %c0_i32_6 : i32
    %c0_i32_7 = arith.constant 0 : i32
    %16 = arith.cmpi slt, %15, %c0_i32_7 : i32
    %c0_i32_8 = arith.constant 0 : i32
    %17 = arith.subi %c0_i32_8, %15 : i32
    %c16_i32_9 = arith.constant 16 : i32
    %18 = arith.cmpi sge, %15, %c16_i32_9 : i32
    %c30_i32_10 = arith.constant 30 : i32
    %19 = arith.subi %c30_i32_10, %15 : i32
    %20 = arith.select %18, %19, %15 : i32
    %21 = arith.select %16, %17, %20 : i32
    %22 = arith.index_cast %21 : i32 to index
    %c0_11 = arith.constant 0 : index
    %c0_12 = arith.constant 0 : index
    %23 = vector.load %arg2[%22, %c0_11, %c0_12] : memref<16x16x8xf32, #tpu.memory_space<vmem>>, vector<1x16x8xf32>
    %24 = vector.shape_cast %23 : vector<1x16x8xf32> to vector<16x8xf32>
    %cst_13 = arith.constant 5.000000e-01 : f32
    %25 = vector.broadcast %cst_13 : f32 to vector<16x8xf32>
    %26 = arith.mulf %24, %25 : vector<16x8xf32>
    %27 = arith.addf %13, %26 : vector<16x8xf32>
    %c2_i32_14 = arith.constant 2 : i32
    %28 = arith.muli %c0_i32, %c2_i32_14 : i32
    %c1_i32 = arith.constant 1 : i32
    %29 = arith.addi %28, %c1_i32 : i32
    %c0_i32_15 = arith.constant 0 : i32
    %30 = arith.cmpi slt, %29, %c0_i32_15 : i32
    %c0_i32_16 = arith.constant 0 : i32
    %31 = arith.subi %c0_i32_16, %29 : i32
    %c16_i32_17 = arith.constant 16 : i32
    %32 = arith.cmpi sge, %29, %c16_i32_17 : i32
    %c30_i32_18 = arith.constant 30 : i32
    %33 = arith.subi %c30_i32_18, %29 : i32
    %34 = arith.select %32, %33, %29 : i32
    %35 = arith.select %30, %31, %34 : i32
    %36 = arith.index_cast %35 : i32 to index
    %c0_19 = arith.constant 0 : index
    %c0_20 = arith.constant 0 : index
    %37 = vector.load %arg2[%36, %c0_19, %c0_20] : memref<16x16x8xf32, #tpu.memory_space<vmem>>, vector<1x16x8xf32>
    %38 = vector.shape_cast %37 : vector<1x16x8xf32> to vector<16x8xf32>
    %cst_21 = arith.constant 2.500000e-01 : f32
    %39 = vector.broadcast %cst_21 : f32 to vector<16x8xf32>
    %40 = arith.mulf %38, %39 : vector<16x8xf32>
    %41 = arith.addf %27, %40 : vector<16x8xf32>
    %cst_22 = arith.constant dense<0.000000e+00> : vector<8x8xf32>
    %42 = tpu.matmul %0, %41, %cst_22 {dimension_numbers = #tpu.dot_dimension_numbers<[1], [0], [0], [1], [0, 0, 1, 1], [], []>} : vector<8x16xf32>, vector<16x8xf32>, vector<8x8xf32> -> vector<8x8xf32>
    %43 = arith.index_cast %c0_i32 : i32 to index
    %c0_23 = arith.constant 0 : index
    %c0_24 = arith.constant 0 : index
    %44 = vector.load %arg3[%43, %c0_23, %c0_24] : memref<8x8x8xf32, #tpu.memory_space<vmem>>, vector<1x8x8xf32>
    %45 = vector.shape_cast %44 : vector<1x8x8xf32> to vector<8x8xf32>
    %46 = vector.shape_cast %42 : vector<8x8xf32> to vector<1x8x8xf32>
    tpu.vector_store %arg3[%43, %c0_23, %c0_24], %46 {strides = array<i32>} : memref<8x8x8xf32, #tpu.memory_space<vmem>>, vector<1x8x8xf32>,
    %c1_i32_25 = arith.constant 1 : i32
    %c2_i32_26 = arith.constant 2 : i32
    %47 = arith.muli %c1_i32_25, %c2_i32_26 : i32
    %c-1_i32_27 = arith.constant -1 : i32
    %48 = arith.addi %47, %c-1_i32_27 : i32
    %c0_i32_28 = arith.constant 0 : i32
    %49 = arith.cmpi slt, %48, %c0_i32_28 : i32
    %c0_i32_29 = arith.constant 0 : i32
    %50 = arith.subi %c0_i32_29, %48 : i32
    %c16_i32_30 = arith.constant 16 : i32
    %51 = arith.cmpi sge, %48, %c16_i32_30 : i32
    %c30_i32_31 = arith.constant 30 : i32
    %52 = arith.subi %c30_i32_31, %48 : i32
    %53 = arith.select %51, %52, %48 : i32
    %54 = arith.select %49, %50, %53 : i32
    %55 = arith.index_cast %54 : i32 to index
    %c0_32 = arith.constant 0 : index
    %c0_33 = arith.constant 0 : index
    %56 = vector.load %arg2[%55, %c0_32, %c0_33] : memref<16x16x8xf32, #tpu.memory_space<vmem>>, vector<1x16x8xf32>
    %57 = vector.shape_cast %56 : vector<1x16x8xf32> to vector<16x8xf32>
    %cst_34 = arith.constant 2.500000e-01 : f32
    %58 = vector.broadcast %cst_34 : f32 to vector<16x8xf32>
    %59 = arith.mulf %57, %58 : vector<16x8xf32>
    %c2_i32_35 = arith.constant 2 : i32
    %60 = arith.muli %c1_i32_25, %c2_i32_35 : i32
    %c0_i32_36 = arith.constant 0 : i32
    %61 = arith.addi %60, %c0_i32_36 : i32
    %c0_i32_37 = arith.constant 0 : i32
    %62 = arith.cmpi slt, %61, %c0_i32_37 : i32
    %c0_i32_38 = arith.constant 0 : i32
    %63 = arith.subi %c0_i32_38, %61 : i32
    %c16_i32_39 = arith.constant 16 : i32
    %64 = arith.cmpi sge, %61, %c16_i32_39 : i32
    %c30_i32_40 = arith.constant 30 : i32
    %65 = arith.subi %c30_i32_40, %61 : i32
    %66 = arith.select %64, %65, %61 : i32
    %67 = arith.select %62, %63, %66 : i32
    %68 = arith.index_cast %67 : i32 to index
    %c0_41 = arith.constant 0 : index
    %c0_42 = arith.constant 0 : index
    %69 = vector.load %arg2[%68, %c0_41, %c0_42] : memref<16x16x8xf32, #tpu.memory_space<vmem>>, vector<1x16x8xf32>
    %70 = vector.shape_cast %69 : vector<1x16x8xf32> to vector<16x8xf32>
    %cst_43 = arith.constant 5.000000e-01 : f32
    %71 = vector.broadcast %cst_43 : f32 to vector<16x8xf32>
    %72 = arith.mulf %70, %71 : vector<16x8xf32>
    %73 = arith.addf %59, %72 : vector<16x8xf32>
    %c2_i32_44 = arith.constant 2 : i32
    %74 = arith.muli %c1_i32_25, %c2_i32_44 : i32
    %c1_i32_45 = arith.constant 1 : i32
    %75 = arith.addi %74, %c1_i32_45 : i32
    %c0_i32_46 = arith.constant 0 : i32
    %76 = arith.cmpi slt, %75, %c0_i32_46 : i32
    %c0_i32_47 = arith.constant 0 : i32
    %77 = arith.subi %c0_i32_47, %75 : i32
    %c16_i32_48 = arith.constant 16 : i32
    %78 = arith.cmpi sge, %75, %c16_i32_48 : i32
    %c30_i32_49 = arith.constant 30 : i32
    %79 = arith.subi %c30_i32_49, %75 : i32
    %80 = arith.select %78, %79, %75 : i32
    %81 = arith.select %76, %77, %80 : i32
    %82 = arith.index_cast %81 : i32 to index
    %c0_50 = arith.constant 0 : index
    %c0_51 = arith.constant 0 : index
    %83 = vector.load %arg2[%82, %c0_50, %c0_51] : memref<16x16x8xf32, #tpu.memory_space<vmem>>, vector<1x16x8xf32>
    %84 = vector.shape_cast %83 : vector<1x16x8xf32> to vector<16x8xf32>
    %cst_52 = arith.constant 2.500000e-01 : f32
    %85 = vector.broadcast %cst_52 : f32 to vector<16x8xf32>
    %86 = arith.mulf %84, %85 : vector<16x8xf32>
    %87 = arith.addf %73, %86 : vector<16x8xf32>
    %cst_53 = arith.constant dense<0.000000e+00> : vector<8x8xf32>
    %88 = tpu.matmul %0, %87, %cst_53 {dimension_numbers = #tpu.dot_dimension_numbers<[1], [0], [0], [1], [0, 0, 1, 1], [], []>} : vector<8x16xf32>, vector<16x8xf32>, vector<8x8xf32> -> vector<8x8xf32>
    %89 = arith.index_cast %c1_i32_25 : i32 to index
    %c0_54 = arith.constant 0 : index
    %c0_55 = arith.constant 0 : index
    %90 = vector.load %arg3[%89, %c0_54, %c0_55] : memref<8x8x8xf32, #tpu.memory_space<vmem>>, vector<1x8x8xf32>
    %91 = vector.shape_cast %90 : vector<1x8x8xf32> to vector<8x8xf32>
    %92 = vector.shape_cast %88 : vector<8x8xf32> to vector<1x8x8xf32>
    tpu.vector_store %arg3[%89, %c0_54, %c0_55], %92 {strides = array<i32>} : memref<8x8x8xf32, #tpu.memory_space<vmem>>, vector<1x8x8xf32>,
    %c2_i32_56 = arith.constant 2 : i32
    %c2_i32_57 = arith.constant 2 : i32
    %93 = arith.muli %c2_i32_56, %c2_i32_57 : i32
    %c-1_i32_58 = arith.constant -1 : i32
    %94 = arith.addi %93, %c-1_i32_58 : i32
    %c0_i32_59 = arith.constant 0 : i32
    %95 = arith.cmpi slt, %94, %c0_i32_59 : i32
    %c0_i32_60 = arith.constant 0 : i32
    %96 = arith.subi %c0_i32_60, %94 : i32
    %c16_i32_61 = arith.constant 16 : i32
    %97 = arith.cmpi sge, %94, %c16_i32_61 : i32
    %c30_i32_62 = arith.constant 30 : i32
    %98 = arith.subi %c30_i32_62, %94 : i32
    %99 = arith.select %97, %98, %94 : i32
    %100 = arith.select %95, %96, %99 : i32
    %101 = arith.index_cast %100 : i32 to index
    %c0_63 = arith.constant 0 : index
    %c0_64 = arith.constant 0 : index
    %102 = vector.load %arg2[%101, %c0_63, %c0_64] : memref<16x16x8xf32, #tpu.memory_space<vmem>>, vector<1x16x8xf32>
    %103 = vector.shape_cast %102 : vector<1x16x8xf32> to vector<16x8xf32>
    %cst_65 = arith.constant 2.500000e-01 : f32
    %104 = vector.broadcast %cst_65 : f32 to vector<16x8xf32>
    %105 = arith.mulf %103, %104 : vector<16x8xf32>
    %c2_i32_66 = arith.constant 2 : i32
    %106 = arith.muli %c2_i32_56, %c2_i32_66 : i32
    %c0_i32_67 = arith.constant 0 : i32
    %107 = arith.addi %106, %c0_i32_67 : i32
    %c0_i32_68 = arith.constant 0 : i32
    %108 = arith.cmpi slt, %107, %c0_i32_68 : i32
    %c0_i32_69 = arith.constant 0 : i32
    %109 = arith.subi %c0_i32_69, %107 : i32
    %c16_i32_70 = arith.constant 16 : i32
    %110 = arith.cmpi sge, %107, %c16_i32_70 : i32
    %c30_i32_71 = arith.constant 30 : i32
    %111 = arith.subi %c30_i32_71, %107 : i32
    %112 = arith.select %110, %111, %107 : i32
    %113 = arith.select %108, %109, %112 : i32
    %114 = arith.index_cast %113 : i32 to index
    %c0_72 = arith.constant 0 : index
    %c0_73 = arith.constant 0 : index
    %115 = vector.load %arg2[%114, %c0_72, %c0_73] : memref<16x16x8xf32, #tpu.memory_space<vmem>>, vector<1x16x8xf32>
    %116 = vector.shape_cast %115 : vector<1x16x8xf32> to vector<16x8xf32>
    %cst_74 = arith.constant 5.000000e-01 : f32
    %117 = vector.broadcast %cst_74 : f32 to vector<16x8xf32>
    %118 = arith.mulf %116, %117 : vector<16x8xf32>
    %119 = arith.addf %105, %118 : vector<16x8xf32>
    %c2_i32_75 = arith.constant 2 : i32
    %120 = arith.muli %c2_i32_56, %c2_i32_75 : i32
    %c1_i32_76 = arith.constant 1 : i32
    %121 = arith.addi %120, %c1_i32_76 : i32
    %c0_i32_77 = arith.constant 0 : i32
    %122 = arith.cmpi slt, %121, %c0_i32_77 : i32
    %c0_i32_78 = arith.constant 0 : i32
    %123 = arith.subi %c0_i32_78, %121 : i32
    %c16_i32_79 = arith.constant 16 : i32
    %124 = arith.cmpi sge, %121, %c16_i32_79 : i32
    %c30_i32_80 = arith.constant 30 : i32
    %125 = arith.subi %c30_i32_80, %121 : i32
    %126 = arith.select %124, %125, %121 : i32
    %127 = arith.select %122, %123, %126 : i32
    %128 = arith.index_cast %127 : i32 to index
    %c0_81 = arith.constant 0 : index
    %c0_82 = arith.constant 0 : index
    %129 = vector.load %arg2[%128, %c0_81, %c0_82] : memref<16x16x8xf32, #tpu.memory_space<vmem>>, vector<1x16x8xf32>
    %130 = vector.shape_cast %129 : vector<1x16x8xf32> to vector<16x8xf32>
    %cst_83 = arith.constant 2.500000e-01 : f32
    %131 = vector.broadcast %cst_83 : f32 to vector<16x8xf32>
    %132 = arith.mulf %130, %131 : vector<16x8xf32>
    %133 = arith.addf %119, %132 : vector<16x8xf32>
    %cst_84 = arith.constant dense<0.000000e+00> : vector<8x8xf32>
    %134 = tpu.matmul %0, %133, %cst_84 {dimension_numbers = #tpu.dot_dimension_numbers<[1], [0], [0], [1], [0, 0, 1, 1], [], []>} : vector<8x16xf32>, vector<16x8xf32>, vector<8x8xf32> -> vector<8x8xf32>
    %135 = arith.index_cast %c2_i32_56 : i32 to index
    %c0_85 = arith.constant 0 : index
    %c0_86 = arith.constant 0 : index
    %136 = vector.load %arg3[%135, %c0_85, %c0_86] : memref<8x8x8xf32, #tpu.memory_space<vmem>>, vector<1x8x8xf32>
    %137 = vector.shape_cast %136 : vector<1x8x8xf32> to vector<8x8xf32>
    %138 = vector.shape_cast %134 : vector<8x8xf32> to vector<1x8x8xf32>
    tpu.vector_store %arg3[%135, %c0_85, %c0_86], %138 {strides = array<i32>} : memref<8x8x8xf32, #tpu.memory_space<vmem>>, vector<1x8x8xf32>,
    %c3_i32 = arith.constant 3 : i32
    %c2_i32_87 = arith.constant 2 : i32
    %139 = arith.muli %c3_i32, %c2_i32_87 : i32
    %c-1_i32_88 = arith.constant -1 : i32
    %140 = arith.addi %139, %c-1_i32_88 : i32
    %c0_i32_89 = arith.constant 0 : i32
    %141 = arith.cmpi slt, %140, %c0_i32_89 : i32
    %c0_i32_90 = arith.constant 0 : i32
    %142 = arith.subi %c0_i32_90, %140 : i32
    %c16_i32_91 = arith.constant 16 : i32
    %143 = arith.cmpi sge, %140, %c16_i32_91 : i32
    %c30_i32_92 = arith.constant 30 : i32
    %144 = arith.subi %c30_i32_92, %140 : i32
    %145 = arith.select %143, %144, %140 : i32
    %146 = arith.select %141, %142, %145 : i32
    %147 = arith.index_cast %146 : i32 to index
    %c0_93 = arith.constant 0 : index
    %c0_94 = arith.constant 0 : index
    %148 = vector.load %arg2[%147, %c0_93, %c0_94] : memref<16x16x8xf32, #tpu.memory_space<vmem>>, vector<1x16x8xf32>
    %149 = vector.shape_cast %148 : vector<1x16x8xf32> to vector<16x8xf32>
    %cst_95 = arith.constant 2.500000e-01 : f32
    %150 = vector.broadcast %cst_95 : f32 to vector<16x8xf32>
    %151 = arith.mulf %149, %150 : vector<16x8xf32>
    %c2_i32_96 = arith.constant 2 : i32
    %152 = arith.muli %c3_i32, %c2_i32_96 : i32
    %c0_i32_97 = arith.constant 0 : i32
    %153 = arith.addi %152, %c0_i32_97 : i32
    %c0_i32_98 = arith.constant 0 : i32
    %154 = arith.cmpi slt, %153, %c0_i32_98 : i32
    %c0_i32_99 = arith.constant 0 : i32
    %155 = arith.subi %c0_i32_99, %153 : i32
    %c16_i32_100 = arith.constant 16 : i32
    %156 = arith.cmpi sge, %153, %c16_i32_100 : i32
    %c30_i32_101 = arith.constant 30 : i32
    %157 = arith.subi %c30_i32_101, %153 : i32
    %158 = arith.select %156, %157, %153 : i32
    %159 = arith.select %154, %155, %158 : i32
    %160 = arith.index_cast %159 : i32 to index
    %c0_102 = arith.constant 0 : index
    %c0_103 = arith.constant 0 : index
    %161 = vector.load %arg2[%160, %c0_102, %c0_103] : memref<16x16x8xf32, #tpu.memory_space<vmem>>, vector<1x16x8xf32>
    %162 = vector.shape_cast %161 : vector<1x16x8xf32> to vector<16x8xf32>
    %cst_104 = arith.constant 5.000000e-01 : f32
    %163 = vector.broadcast %cst_104 : f32 to vector<16x8xf32>
    %164 = arith.mulf %162, %163 : vector<16x8xf32>
    %165 = arith.addf %151, %164 : vector<16x8xf32>
    %c2_i32_105 = arith.constant 2 : i32
    %166 = arith.muli %c3_i32, %c2_i32_105 : i32
    %c1_i32_106 = arith.constant 1 : i32
    %167 = arith.addi %166, %c1_i32_106 : i32
    %c0_i32_107 = arith.constant 0 : i32
    %168 = arith.cmpi slt, %167, %c0_i32_107 : i32
    %c0_i32_108 = arith.constant 0 : i32
    %169 = arith.subi %c0_i32_108, %167 : i32
    %c16_i32_109 = arith.constant 16 : i32
    %170 = arith.cmpi sge, %167, %c16_i32_109 : i32
    %c30_i32_110 = arith.constant 30 : i32
    %171 = arith.subi %c30_i32_110, %167 : i32
    %172 = arith.select %170, %171, %167 : i32
    %173 = arith.select %168, %169, %172 : i32
    %174 = arith.index_cast %173 : i32 to index
    %c0_111 = arith.constant 0 : index
    %c0_112 = arith.constant 0 : index
    %175 = vector.load %arg2[%174, %c0_111, %c0_112] : memref<16x16x8xf32, #tpu.memory_space<vmem>>, vector<1x16x8xf32>
    %176 = vector.shape_cast %175 : vector<1x16x8xf32> to vector<16x8xf32>
    %cst_113 = arith.constant 2.500000e-01 : f32
    %177 = vector.broadcast %cst_113 : f32 to vector<16x8xf32>
    %178 = arith.mulf %176, %177 : vector<16x8xf32>
    %179 = arith.addf %165, %178 : vector<16x8xf32>
    %cst_114 = arith.constant dense<0.000000e+00> : vector<8x8xf32>
    %180 = tpu.matmul %0, %179, %cst_114 {dimension_numbers = #tpu.dot_dimension_numbers<[1], [0], [0], [1], [0, 0, 1, 1], [], []>} : vector<8x16xf32>, vector<16x8xf32>, vector<8x8xf32> -> vector<8x8xf32>
    %181 = arith.index_cast %c3_i32 : i32 to index
    %c0_115 = arith.constant 0 : index
    %c0_116 = arith.constant 0 : index
    %182 = vector.load %arg3[%181, %c0_115, %c0_116] : memref<8x8x8xf32, #tpu.memory_space<vmem>>, vector<1x8x8xf32>
    %183 = vector.shape_cast %182 : vector<1x8x8xf32> to vector<8x8xf32>
    %184 = vector.shape_cast %180 : vector<8x8xf32> to vector<1x8x8xf32>
    tpu.vector_store %arg3[%181, %c0_115, %c0_116], %184 {strides = array<i32>} : memref<8x8x8xf32, #tpu.memory_space<vmem>>, vector<1x8x8xf32>,
    %c4_i32 = arith.constant 4 : i32
    %c2_i32_117 = arith.constant 2 : i32
    %185 = arith.muli %c4_i32, %c2_i32_117 : i32
    %c-1_i32_118 = arith.constant -1 : i32
    %186 = arith.addi %185, %c-1_i32_118 : i32
    %c0_i32_119 = arith.constant 0 : i32
    %187 = arith.cmpi slt, %186, %c0_i32_119 : i32
    %c0_i32_120 = arith.constant 0 : i32
    %188 = arith.subi %c0_i32_120, %186 : i32
    %c16_i32_121 = arith.constant 16 : i32
    %189 = arith.cmpi sge, %186, %c16_i32_121 : i32
    %c30_i32_122 = arith.constant 30 : i32
    %190 = arith.subi %c30_i32_122, %186 : i32
    %191 = arith.select %189, %190, %186 : i32
    %192 = arith.select %187, %188, %191 : i32
    %193 = arith.index_cast %192 : i32 to index
    %c0_123 = arith.constant 0 : index
    %c0_124 = arith.constant 0 : index
    %194 = vector.load %arg2[%193, %c0_123, %c0_124] : memref<16x16x8xf32, #tpu.memory_space<vmem>>, vector<1x16x8xf32>
    %195 = vector.shape_cast %194 : vector<1x16x8xf32> to vector<16x8xf32>
    %cst_125 = arith.constant 2.500000e-01 : f32
    %196 = vector.broadcast %cst_125 : f32 to vector<16x8xf32>
    %197 = arith.mulf %195, %196 : vector<16x8xf32>
    %c2_i32_126 = arith.constant 2 : i32
    %198 = arith.muli %c4_i32, %c2_i32_126 : i32
    %c0_i32_127 = arith.constant 0 : i32
    %199 = arith.addi %198, %c0_i32_127 : i32
    %c0_i32_128 = arith.constant 0 : i32
    %200 = arith.cmpi slt, %199, %c0_i32_128 : i32
    %c0_i32_129 = arith.constant 0 : i32
    %201 = arith.subi %c0_i32_129, %199 : i32
    %c16_i32_130 = arith.constant 16 : i32
    %202 = arith.cmpi sge, %199, %c16_i32_130 : i32
    %c30_i32_131 = arith.constant 30 : i32
    %203 = arith.subi %c30_i32_131, %199 : i32
    %204 = arith.select %202, %203, %199 : i32
    %205 = arith.select %200, %201, %204 : i32
    %206 = arith.index_cast %205 : i32 to index
    %c0_132 = arith.constant 0 : index
    %c0_133 = arith.constant 0 : index
    %207 = vector.load %arg2[%206, %c0_132, %c0_133] : memref<16x16x8xf32, #tpu.memory_space<vmem>>, vector<1x16x8xf32>
    %208 = vector.shape_cast %207 : vector<1x16x8xf32> to vector<16x8xf32>
    %cst_134 = arith.constant 5.000000e-01 : f32
    %209 = vector.broadcast %cst_134 : f32 to vector<16x8xf32>
    %210 = arith.mulf %208, %209 : vector<16x8xf32>
    %211 = arith.addf %197, %210 : vector<16x8xf32>
    %c2_i32_135 = arith.constant 2 : i32
    %212 = arith.muli %c4_i32, %c2_i32_135 : i32
    %c1_i32_136 = arith.constant 1 : i32
    %213 = arith.addi %212, %c1_i32_136 : i32
    %c0_i32_137 = arith.constant 0 : i32
    %214 = arith.cmpi slt, %213, %c0_i32_137 : i32
    %c0_i32_138 = arith.constant 0 : i32
    %215 = arith.subi %c0_i32_138, %213 : i32
    %c16_i32_139 = arith.constant 16 : i32
    %216 = arith.cmpi sge, %213, %c16_i32_139 : i32
    %c30_i32_140 = arith.constant 30 : i32
    %217 = arith.subi %c30_i32_140, %213 : i32
    %218 = arith.select %216, %217, %213 : i32
    %219 = arith.select %214, %215, %218 : i32
    %220 = arith.index_cast %219 : i32 to index
    %c0_141 = arith.constant 0 : index
    %c0_142 = arith.constant 0 : index
    %221 = vector.load %arg2[%220, %c0_141, %c0_142] : memref<16x16x8xf32, #tpu.memory_space<vmem>>, vector<1x16x8xf32>
    %222 = vector.shape_cast %221 : vector<1x16x8xf32> to vector<16x8xf32>
    %cst_143 = arith.constant 2.500000e-01 : f32
    %223 = vector.broadcast %cst_143 : f32 to vector<16x8xf32>
    %224 = arith.mulf %222, %223 : vector<16x8xf32>
    %225 = arith.addf %211, %224 : vector<16x8xf32>
    %cst_144 = arith.constant dense<0.000000e+00> : vector<8x8xf32>
    %226 = tpu.matmul %0, %225, %cst_144 {dimension_numbers = #tpu.dot_dimension_numbers<[1], [0], [0], [1], [0, 0, 1, 1], [], []>} : vector<8x16xf32>, vector<16x8xf32>, vector<8x8xf32> -> vector<8x8xf32>
    %227 = arith.index_cast %c4_i32 : i32 to index
    %c0_145 = arith.constant 0 : index
    %c0_146 = arith.constant 0 : index
    %228 = vector.load %arg3[%227, %c0_145, %c0_146] : memref<8x8x8xf32, #tpu.memory_space<vmem>>, vector<1x8x8xf32>
    %229 = vector.shape_cast %228 : vector<1x8x8xf32> to vector<8x8xf32>
    %230 = vector.shape_cast %226 : vector<8x8xf32> to vector<1x8x8xf32>
    tpu.vector_store %arg3[%227, %c0_145, %c0_146], %230 {strides = array<i32>} : memref<8x8x8xf32, #tpu.memory_space<vmem>>, vector<1x8x8xf32>,
    %c5_i32 = arith.constant 5 : i32
    %c2_i32_147 = arith.constant 2 : i32
    %231 = arith.muli %c5_i32, %c2_i32_147 : i32
    %c-1_i32_148 = arith.constant -1 : i32
    %232 = arith.addi %231, %c-1_i32_148 : i32
    %c0_i32_149 = arith.constant 0 : i32
    %233 = arith.cmpi slt, %232, %c0_i32_149 : i32
    %c0_i32_150 = arith.constant 0 : i32
    %234 = arith.subi %c0_i32_150, %232 : i32
    %c16_i32_151 = arith.constant 16 : i32
    %235 = arith.cmpi sge, %232, %c16_i32_151 : i32
    %c30_i32_152 = arith.constant 30 : i32
    %236 = arith.subi %c30_i32_152, %232 : i32
    %237 = arith.select %235, %236, %232 : i32
    %238 = arith.select %233, %234, %237 : i32
    %239 = arith.index_cast %238 : i32 to index
    %c0_153 = arith.constant 0 : index
    %c0_154 = arith.constant 0 : index
    %240 = vector.load %arg2[%239, %c0_153, %c0_154] : memref<16x16x8xf32, #tpu.memory_space<vmem>>, vector<1x16x8xf32>
    %241 = vector.shape_cast %240 : vector<1x16x8xf32> to vector<16x8xf32>
    %cst_155 = arith.constant 2.500000e-01 : f32
    %242 = vector.broadcast %cst_155 : f32 to vector<16x8xf32>
    %243 = arith.mulf %241, %242 : vector<16x8xf32>
    %c2_i32_156 = arith.constant 2 : i32
    %244 = arith.muli %c5_i32, %c2_i32_156 : i32
    %c0_i32_157 = arith.constant 0 : i32
    %245 = arith.addi %244, %c0_i32_157 : i32
    %c0_i32_158 = arith.constant 0 : i32
    %246 = arith.cmpi slt, %245, %c0_i32_158 : i32
    %c0_i32_159 = arith.constant 0 : i32
    %247 = arith.subi %c0_i32_159, %245 : i32
    %c16_i32_160 = arith.constant 16 : i32
    %248 = arith.cmpi sge, %245, %c16_i32_160 : i32
    %c30_i32_161 = arith.constant 30 : i32
    %249 = arith.subi %c30_i32_161, %245 : i32
    %250 = arith.select %248, %249, %245 : i32
    %251 = arith.select %246, %247, %250 : i32
    %252 = arith.index_cast %251 : i32 to index
    %c0_162 = arith.constant 0 : index
    %c0_163 = arith.constant 0 : index
    %253 = vector.load %arg2[%252, %c0_162, %c0_163] : memref<16x16x8xf32, #tpu.memory_space<vmem>>, vector<1x16x8xf32>
    %254 = vector.shape_cast %253 : vector<1x16x8xf32> to vector<16x8xf32>
    %cst_164 = arith.constant 5.000000e-01 : f32
    %255 = vector.broadcast %cst_164 : f32 to vector<16x8xf32>
    %256 = arith.mulf %254, %255 : vector<16x8xf32>
    %257 = arith.addf %243, %256 : vector<16x8xf32>
    %c2_i32_165 = arith.constant 2 : i32
    %258 = arith.muli %c5_i32, %c2_i32_165 : i32
    %c1_i32_166 = arith.constant 1 : i32
    %259 = arith.addi %258, %c1_i32_166 : i32
    %c0_i32_167 = arith.constant 0 : i32
    %260 = arith.cmpi slt, %259, %c0_i32_167 : i32
    %c0_i32_168 = arith.constant 0 : i32
    %261 = arith.subi %c0_i32_168, %259 : i32
    %c16_i32_169 = arith.constant 16 : i32
    %262 = arith.cmpi sge, %259, %c16_i32_169 : i32
    %c30_i32_170 = arith.constant 30 : i32
    %263 = arith.subi %c30_i32_170, %259 : i32
    %264 = arith.select %262, %263, %259 : i32
    %265 = arith.select %260, %261, %264 : i32
    %266 = arith.index_cast %265 : i32 to index
    %c0_171 = arith.constant 0 : index
    %c0_172 = arith.constant 0 : index
    %267 = vector.load %arg2[%266, %c0_171, %c0_172] : memref<16x16x8xf32, #tpu.memory_space<vmem>>, vector<1x16x8xf32>
    %268 = vector.shape_cast %267 : vector<1x16x8xf32> to vector<16x8xf32>
    %cst_173 = arith.constant 2.500000e-01 : f32
    %269 = vector.broadcast %cst_173 : f32 to vector<16x8xf32>
    %270 = arith.mulf %268, %269 : vector<16x8xf32>
    %271 = arith.addf %257, %270 : vector<16x8xf32>
    %cst_174 = arith.constant dense<0.000000e+00> : vector<8x8xf32>
    %272 = tpu.matmul %0, %271, %cst_174 {dimension_numbers = #tpu.dot_dimension_numbers<[1], [0], [0], [1], [0, 0, 1, 1], [], []>} : vector<8x16xf32>, vector<16x8xf32>, vector<8x8xf32> -> vector<8x8xf32>
    %273 = arith.index_cast %c5_i32 : i32 to index
    %c0_175 = arith.constant 0 : index
    %c0_176 = arith.constant 0 : index
    %274 = vector.load %arg3[%273, %c0_175, %c0_176] : memref<8x8x8xf32, #tpu.memory_space<vmem>>, vector<1x8x8xf32>
    %275 = vector.shape_cast %274 : vector<1x8x8xf32> to vector<8x8xf32>
    %276 = vector.shape_cast %272 : vector<8x8xf32> to vector<1x8x8xf32>
    tpu.vector_store %arg3[%273, %c0_175, %c0_176], %276 {strides = array<i32>} : memref<8x8x8xf32, #tpu.memory_space<vmem>>, vector<1x8x8xf32>,
    %c6_i32 = arith.constant 6 : i32
    %c2_i32_177 = arith.constant 2 : i32
    %277 = arith.muli %c6_i32, %c2_i32_177 : i32
    %c-1_i32_178 = arith.constant -1 : i32
    %278 = arith.addi %277, %c-1_i32_178 : i32
    %c0_i32_179 = arith.constant 0 : i32
    %279 = arith.cmpi slt, %278, %c0_i32_179 : i32
    %c0_i32_180 = arith.constant 0 : i32
    %280 = arith.subi %c0_i32_180, %278 : i32
    %c16_i32_181 = arith.constant 16 : i32
    %281 = arith.cmpi sge, %278, %c16_i32_181 : i32
    %c30_i32_182 = arith.constant 30 : i32
    %282 = arith.subi %c30_i32_182, %278 : i32
    %283 = arith.select %281, %282, %278 : i32
    %284 = arith.select %279, %280, %283 : i32
    %285 = arith.index_cast %284 : i32 to index
    %c0_183 = arith.constant 0 : index
    %c0_184 = arith.constant 0 : index
    %286 = vector.load %arg2[%285, %c0_183, %c0_184] : memref<16x16x8xf32, #tpu.memory_space<vmem>>, vector<1x16x8xf32>
    %287 = vector.shape_cast %286 : vector<1x16x8xf32> to vector<16x8xf32>
    %cst_185 = arith.constant 2.500000e-01 : f32
    %288 = vector.broadcast %cst_185 : f32 to vector<16x8xf32>
    %289 = arith.mulf %287, %288 : vector<16x8xf32>
    %c2_i32_186 = arith.constant 2 : i32
    %290 = arith.muli %c6_i32, %c2_i32_186 : i32
    %c0_i32_187 = arith.constant 0 : i32
    %291 = arith.addi %290, %c0_i32_187 : i32
    %c0_i32_188 = arith.constant 0 : i32
    %292 = arith.cmpi slt, %291, %c0_i32_188 : i32
    %c0_i32_189 = arith.constant 0 : i32
    %293 = arith.subi %c0_i32_189, %291 : i32
    %c16_i32_190 = arith.constant 16 : i32
    %294 = arith.cmpi sge, %291, %c16_i32_190 : i32
    %c30_i32_191 = arith.constant 30 : i32
    %295 = arith.subi %c30_i32_191, %291 : i32
    %296 = arith.select %294, %295, %291 : i32
    %297 = arith.select %292, %293, %296 : i32
    %298 = arith.index_cast %297 : i32 to index
    %c0_192 = arith.constant 0 : index
    %c0_193 = arith.constant 0 : index
    %299 = vector.load %arg2[%298, %c0_192, %c0_193] : memref<16x16x8xf32, #tpu.memory_space<vmem>>, vector<1x16x8xf32>
    %300 = vector.shape_cast %299 : vector<1x16x8xf32> to vector<16x8xf32>
    %cst_194 = arith.constant 5.000000e-01 : f32
    %301 = vector.broadcast %cst_194 : f32 to vector<16x8xf32>
    %302 = arith.mulf %300, %301 : vector<16x8xf32>
    %303 = arith.addf %289, %302 : vector<16x8xf32>
    %c2_i32_195 = arith.constant 2 : i32
    %304 = arith.muli %c6_i32, %c2_i32_195 : i32
    %c1_i32_196 = arith.constant 1 : i32
    %305 = arith.addi %304, %c1_i32_196 : i32
    %c0_i32_197 = arith.constant 0 : i32
    %306 = arith.cmpi slt, %305, %c0_i32_197 : i32
    %c0_i32_198 = arith.constant 0 : i32
    %307 = arith.subi %c0_i32_198, %305 : i32
    %c16_i32_199 = arith.constant 16 : i32
    %308 = arith.cmpi sge, %305, %c16_i32_199 : i32
    %c30_i32_200 = arith.constant 30 : i32
    %309 = arith.subi %c30_i32_200, %305 : i32
    %310 = arith.select %308, %309, %305 : i32
    %311 = arith.select %306, %307, %310 : i32
    %312 = arith.index_cast %311 : i32 to index
    %c0_201 = arith.constant 0 : index
    %c0_202 = arith.constant 0 : index
    %313 = vector.load %arg2[%312, %c0_201, %c0_202] : memref<16x16x8xf32, #tpu.memory_space<vmem>>, vector<1x16x8xf32>
    %314 = vector.shape_cast %313 : vector<1x16x8xf32> to vector<16x8xf32>
    %cst_203 = arith.constant 2.500000e-01 : f32
    %315 = vector.broadcast %cst_203 : f32 to vector<16x8xf32>
    %316 = arith.mulf %314, %315 : vector<16x8xf32>
    %317 = arith.addf %303, %316 : vector<16x8xf32>
    %cst_204 = arith.constant dense<0.000000e+00> : vector<8x8xf32>
    %318 = tpu.matmul %0, %317, %cst_204 {dimension_numbers = #tpu.dot_dimension_numbers<[1], [0], [0], [1], [0, 0, 1, 1], [], []>} : vector<8x16xf32>, vector<16x8xf32>, vector<8x8xf32> -> vector<8x8xf32>
    %319 = arith.index_cast %c6_i32 : i32 to index
    %c0_205 = arith.constant 0 : index
    %c0_206 = arith.constant 0 : index
    %320 = vector.load %arg3[%319, %c0_205, %c0_206] : memref<8x8x8xf32, #tpu.memory_space<vmem>>, vector<1x8x8xf32>
    %321 = vector.shape_cast %320 : vector<1x8x8xf32> to vector<8x8xf32>
    %322 = vector.shape_cast %318 : vector<8x8xf32> to vector<1x8x8xf32>
    tpu.vector_store %arg3[%319, %c0_205, %c0_206], %322 {strides = array<i32>} : memref<8x8x8xf32, #tpu.memory_space<vmem>>, vector<1x8x8xf32>,
    %c7_i32 = arith.constant 7 : i32
    %c2_i32_207 = arith.constant 2 : i32
    %323 = arith.muli %c7_i32, %c2_i32_207 : i32
    %c-1_i32_208 = arith.constant -1 : i32
    %324 = arith.addi %323, %c-1_i32_208 : i32
    %c0_i32_209 = arith.constant 0 : i32
    %325 = arith.cmpi slt, %324, %c0_i32_209 : i32
    %c0_i32_210 = arith.constant 0 : i32
    %326 = arith.subi %c0_i32_210, %324 : i32
    %c16_i32_211 = arith.constant 16 : i32
    %327 = arith.cmpi sge, %324, %c16_i32_211 : i32
    %c30_i32_212 = arith.constant 30 : i32
    %328 = arith.subi %c30_i32_212, %324 : i32
    %329 = arith.select %327, %328, %324 : i32
    %330 = arith.select %325, %326, %329 : i32
    %331 = arith.index_cast %330 : i32 to index
    %c0_213 = arith.constant 0 : index
    %c0_214 = arith.constant 0 : index
    %332 = vector.load %arg2[%331, %c0_213, %c0_214] : memref<16x16x8xf32, #tpu.memory_space<vmem>>, vector<1x16x8xf32>
    %333 = vector.shape_cast %332 : vector<1x16x8xf32> to vector<16x8xf32>
    %cst_215 = arith.constant 2.500000e-01 : f32
    %334 = vector.broadcast %cst_215 : f32 to vector<16x8xf32>
    %335 = arith.mulf %333, %334 : vector<16x8xf32>
    %c2_i32_216 = arith.constant 2 : i32
    %336 = arith.muli %c7_i32, %c2_i32_216 : i32
    %c0_i32_217 = arith.constant 0 : i32
    %337 = arith.addi %336, %c0_i32_217 : i32
    %c0_i32_218 = arith.constant 0 : i32
    %338 = arith.cmpi slt, %337, %c0_i32_218 : i32
    %c0_i32_219 = arith.constant 0 : i32
    %339 = arith.subi %c0_i32_219, %337 : i32
    %c16_i32_220 = arith.constant 16 : i32
    %340 = arith.cmpi sge, %337, %c16_i32_220 : i32
    %c30_i32_221 = arith.constant 30 : i32
    %341 = arith.subi %c30_i32_221, %337 : i32
    %342 = arith.select %340, %341, %337 : i32
    %343 = arith.select %338, %339, %342 : i32
    %344 = arith.index_cast %343 : i32 to index
    %c0_222 = arith.constant 0 : index
    %c0_223 = arith.constant 0 : index
    %345 = vector.load %arg2[%344, %c0_222, %c0_223] : memref<16x16x8xf32, #tpu.memory_space<vmem>>, vector<1x16x8xf32>
    %346 = vector.shape_cast %345 : vector<1x16x8xf32> to vector<16x8xf32>
    %cst_224 = arith.constant 5.000000e-01 : f32
    %347 = vector.broadcast %cst_224 : f32 to vector<16x8xf32>
    %348 = arith.mulf %346, %347 : vector<16x8xf32>
    %349 = arith.addf %335, %348 : vector<16x8xf32>
    %c2_i32_225 = arith.constant 2 : i32
    %350 = arith.muli %c7_i32, %c2_i32_225 : i32
    %c1_i32_226 = arith.constant 1 : i32
    %351 = arith.addi %350, %c1_i32_226 : i32
    %c0_i32_227 = arith.constant 0 : i32
    %352 = arith.cmpi slt, %351, %c0_i32_227 : i32
    %c0_i32_228 = arith.constant 0 : i32
    %353 = arith.subi %c0_i32_228, %351 : i32
    %c16_i32_229 = arith.constant 16 : i32
    %354 = arith.cmpi sge, %351, %c16_i32_229 : i32
    %c30_i32_230 = arith.constant 30 : i32
    %355 = arith.subi %c30_i32_230, %351 : i32
    %356 = arith.select %354, %355, %351 : i32
    %357 = arith.select %352, %353, %356 : i32
    %358 = arith.index_cast %357 : i32 to index
    %c0_231 = arith.constant 0 : index
    %c0_232 = arith.constant 0 : index
    %359 = vector.load %arg2[%358, %c0_231, %c0_232] : memref<16x16x8xf32, #tpu.memory_space<vmem>>, vector<1x16x8xf32>
    %360 = vector.shape_cast %359 : vector<1x16x8xf32> to vector<16x8xf32>
    %cst_233 = arith.constant 2.500000e-01 : f32
    %361 = vector.broadcast %cst_233 : f32 to vector<16x8xf32>
    %362 = arith.mulf %360, %361 : vector<16x8xf32>
    %363 = arith.addf %349, %362 : vector<16x8xf32>
    %cst_234 = arith.constant dense<0.000000e+00> : vector<8x8xf32>
    %364 = tpu.matmul %0, %363, %cst_234 {dimension_numbers = #tpu.dot_dimension_numbers<[1], [0], [0], [1], [0, 0, 1, 1], [], []>} : vector<8x16xf32>, vector<16x8xf32>, vector<8x8xf32> -> vector<8x8xf32>
    %365 = arith.index_cast %c7_i32 : i32 to index
    %c0_235 = arith.constant 0 : index
    %c0_236 = arith.constant 0 : index
    %366 = vector.load %arg3[%365, %c0_235, %c0_236] : memref<8x8x8xf32, #tpu.memory_space<vmem>>, vector<1x8x8xf32>
    %367 = vector.shape_cast %366 : vector<1x8x8xf32> to vector<8x8xf32>
    %368 = vector.shape_cast %364 : vector<8x8xf32> to vector<1x8x8xf32>
    tpu.vector_store %arg3[%365, %c0_235, %c0_236], %368 {strides = array<i32>} : memref<8x8x8xf32, #tpu.memory_space<vmem>>, vector<1x8x8xf32>,
    %c8_i32 = arith.constant 8 : i32
    return
  }
  func.func @transform_0(%arg0: i32) -> (i32, i32) {
    %c0_i32 = arith.constant 0 : i32
    %c0_i32_0 = arith.constant 0 : i32
    %c0_i32_1 = arith.constant 0 : i32
    return %c0_i32, %c0_i32_0 : i32, i32
  }
  func.func @transform_1(%arg0: i32) -> (i32, i32, i32) {
    %c0_i32 = arith.constant 0 : i32
    %c0_i32_0 = arith.constant 0 : i32
    %c0_i32_1 = arith.constant 0 : i32
    return %c0_i32, %c0_i32_0, %arg0 : i32, i32, i32
  }
  func.func @transform_2(%arg0: i32) -> (i32, i32, i32) {
    %c0_i32 = arith.constant 0 : i32
    %c0_i32_0 = arith.constant 0 : i32
    %c0_i32_1 = arith.constant 0 : i32
    return %c0_i32, %c0_i32_0, %arg0 : i32, i32, i32
  }
}

</mosaic_0001>

<llo_original>
// kernel: tpu_custom_call.1
$region0: #{tpu_custom_call.1}
  #allocation0 [shape = 'u32[]', space=smem, size = 0x4, offset = 0x4, fixed_abs, tag = 'smem constant byte address 0x4 - core index']
  #allocation1 [shape = 'u32[144,128]{1,0:T(1,128)}', space=vmem, size = 0x12000, scoped, tag = 'internal scratch']
  %s0 = inlined_call_operand.vmem [shape: f32[8,16], index: 0, kind: input, shape index: {}]
  %s1 = inlined_call_operand.vmem [shape: f32[16,16,8], index: 1, kind: input, shape index: {}]
  %s2 = inlined_call_operand.hbm [shape: f32[8,8,8], index: 2, kind: output, shape index: {}]
  %s3 = sld [smem:[#allocation0]]
  $region18: #{tpu_custom_call.1} parent=0
    _
  %s5 = ssub.s32 1, %s3
  %s6 = scalar_select 0, %s5, %s3
  $region1: #{tpu_custom_call.1} parent=0
    #allocation2 [shape = 'u8[32768]{0}', space=vmem, size = 0x8000, scoped, tag = 'output window, operand 0, single buffered']
    #allocation3 [shape = 's32[1]{0}', space=sflag, size = 0x4, scoped, tag = 'scoped memory for tpu_custom_call.1']
    %7 = vsyncpa [#allocation3], 0
    // Predicated region
    $region2: #{tpu_custom_call.1} parent=1 // pred_check
      _
    $region3: #{tpu_custom_call.1} parent=1 // pred_check_branch
      %9 = sbr.rel (0) target = $region5
    $region4: #{tpu_custom_call.1} parent=1 // pred_region
      _
    $region5: #{tpu_custom_call.1} parent=1 // pred_fallthru
      _
    // Predicated region
    $region6: #{tpu_custom_call.1} parent=1 // pred_check
      _
    $region7: #{tpu_custom_call.1} parent=1 // pred_check_branch
      %11 = sbr.rel (0) target = $region9
    $region8: #{tpu_custom_call.1} parent=1 // pred_region
      _
    $region9: #{tpu_custom_call.1} parent=1 // pred_fallthru
      _
    %v12 = vld [vmem:[%s0] sm:$0xff]
    %s13 = scalar_lea.vmem %s1, 16
    %v14 = vld [vmem:[%s13] sm:$0xff]
    %v15 = vld [vmem:[%s13 + $0x8] sm:$0xff]
    %v16 = vmul.f32 %v14, 0.25
    %v17 = vmul.f32 %v15, 0.25
    %v18 = vld [vmem:[%s1] sm:$0xff]
    %v19 = vld [vmem:[%s1 + $0x8] sm:$0xff]
    %v20 = vmul.f32 %v18, 0.5
    %v21 = vmul.f32 %v19, 0.5
    %v22 = vadd.f32 %v16, %v20
    %v23 = vadd.f32 %v17, %v21
    %v24 = vadd.f32 %v22, %v16
    %v25 = vadd.f32 %v23, %v17
    %vm26 = vcmask 130048
    %v28 = vsel %vm26, %v12, 0
    %30 = vmatprep.subr.mxu0 0.0
    %31 = vmatpush1.msra.mxu0 %v24
    %32 = vmatprep.subr.mxu0 0.0
    %33 = vmatpush1.msra.mxu0 %v25
    %34 = vmatprep.subr.mxu0 0.0
    %35 = vmatpush1.msra.mxu0 0.0
    %36 = vmatprep.subr.mxu0 0.0
    %37 = vmatpush1.msra.mxu0 0.0
    %38 = vmatprep.subr.mxu0 0.0
    %39 = vmatpush1.msra.mxu0 0.0
    %40 = vmatprep.subr.mxu0 0.0
    %41 = vmatpush1.msra.mxu0 0.0
    %42 = vmatprep.subr.mxu0 0.0
    %43 = vmatpush1.msra.mxu0 0.0
    %44 = vmatprep.subr.mxu0 0.0
    %45 = vmatpush1.msra.mxu0 0.0
    %46 = vmatprep.subr.mxu0 0.0
    %47 = vmatpush1.msra.mxu0 0.0
    %48 = vmatprep.subr.mxu0 0.0
    %49 = vmatpush1.msra.mxu0 0.0
    %50 = vmatprep.subr.mxu0 0.0
    %51 = vmatpush1.msra.mxu0 0.0
    %52 = vmatprep.subr.mxu0 0.0
    %53 = vmatpush1.msra.mxu0 0.0
    %54 = vmatprep.subr.mxu0 0.0
    %55 = vmatpush1.msra.mxu0 0.0
    %56 = vmatprep.subr.mxu0 0.0
    %57 = vmatpush1.msra.mxu0 0.0
    %58 = vmatprep.subr.mxu0 0.0
    %59 = vmatpush1.msra.mxu0 0.0
    %60 = vmatprep.subr.mxu0 0.0
    %61 = vmatpush1.msra.mxu0 0.0
    %62 = vmatprep.subr.mxu0 0.0
    %63 = vmatpush1.msra.mxu0 0.0
    %64 = vmatprep.subr.mxu0 0.0
    %65 = vmatpush1.msra.mxu0 0.0
    %66 = vmatprep.subr.mxu0 0.0
    %67 = vmatpush1.msra.mxu0 0.0
    %68 = vmatprep.subr.mxu0 0.0
    %69 = vmatpush1.msra.mxu0 0.0
    %70 = vmatprep.subr.mxu0 0.0
    %71 = vmatpush1.msra.mxu0 0.0
    %72 = vmatprep.subr.mxu0 0.0
    %73 = vmatpush1.msra.mxu0 0.0
    %74 = vmatprep.subr.mxu0 0.0
    %75 = vmatpush1.msra.mxu0 0.0
    %76 = vmatprep.subr.mxu0 0.0
    %77 = vmatpush1.msra.mxu0 0.0
    %78 = vmatprep.subr.mxu0 0.0
    %79 = vmatpush1.msra.mxu0 0.0
    %80 = vmatprep.subr.mxu0 0.0
    %81 = vmatpush1.msra.mxu0 0.0
    %82 = vmatprep.subr.mxu0 0.0
    %83 = vmatpush1.msra.mxu0 0.0
    %84 = vmatprep.subr.mxu0 0.0
    %85 = vmatpush1.msra.mxu0 0.0
    %86 = vmatprep.subr.mxu0 0.0
    %87 = vmatpush1.msra.mxu0 0.0
    %88 = vmatprep.subr.mxu0 0.0
    %89 = vmatpush1.msra.mxu0 0.0
    %90 = vmatprep.subr.mxu0 0.0
    %91 = vmatpush1.msra.mxu0 0.0
    %92 = vmatprep.subr.mxu0 0.0
    %93 = vmatpush1.msra.mxu0 0.0
    %94 = vmatprep.mubr.f32.mxu0 0.0
    %95 = vmatmul.mubr.f32.gmra.mrb[0].mxu0 %v28
    %v96 = vpop.f32.mrb[0].mxu0
    %v97 = vadd.f32 0.0, %v96
    %v98 = vpop.f32.mrb[0].mxu0
    %99 = vdwg.mxu0
    %vm100 = vcmask 64512
    %101 = vst.msk [vmem:[#allocation2] sm:$0xff] %vm100, %v97
    %v102 = vld [vmem:[%s13] sm:$0xff]
    %v103 = vld [vmem:[%s13 + $0x8] sm:$0xff]
    %v104 = vmul.f32 %v102, 0.25
    %v105 = vmul.f32 %v103, 0.25
    %s106 = scalar_lea.vmem %s1, 32
    %v107 = vld [vmem:[%s106] sm:$0xff]
    %v108 = vld [vmem:[%s106 + $0x8] sm:$0xff]
    %v109 = vmul.f32 %v107, 0.5
    %v110 = vmul.f32 %v108, 0.5
    %v111 = vadd.f32 %v104, %v109
    %v112 = vadd.f32 %v105, %v110
    %s113 = scalar_lea.vmem %s1, 48
    %v114 = vld [vmem:[%s113] sm:$0xff]
    %v115 = vld [vmem:[%s113 + $0x8] sm:$0xff]
    %v116 = vmul.f32 %v114, 0.25
    %v117 = vmul.f32 %v115, 0.25
    %v118 = vadd.f32 %v111, %v116
    %v119 = vadd.f32 %v112, %v117
    %120 = vmatprep.subr.mxu0 0.0
    %121 = vmatpush1.msra.mxu0 %v118
    %122 = vmatprep.subr.mxu0 0.0
    %123 = vmatpush1.msra.mxu0 %v119
    %124 = vmatprep.subr.mxu0 0.0
    %125 = vmatpush1.msra.mxu0 0.0
    %126 = vmatprep.subr.mxu0 0.0
    %127 = vmatpush1.msra.mxu0 0.0
    %128 = vmatprep.subr.mxu0 0.0
    %129 = vmatpush1.msra.mxu0 0.0
    %130 = vmatprep.subr.mxu0 0.0
    %131 = vmatpush1.msra.mxu0 0.0
    %132 = vmatprep.subr.mxu0 0.0
    %133 = vmatpush1.msra.mxu0 0.0
    %134 = vmatprep.subr.mxu0 0.0
    %135 = vmatpush1.msra.mxu0 0.0
    %136 = vmatprep.subr.mxu0 0.0
    %137 = vmatpush1.msra.mxu0 0.0
    %138 = vmatprep.subr.mxu0 0.0
    %139 = vmatpush1.msra.mxu0 0.0
    %140 = vmatprep.subr.mxu0 0.0
    %141 = vmatpush1.msra.mxu0 0.0
    %142 = vmatprep.subr.mxu0 0.0
    %143 = vmatpush1.msra.mxu0 0.0
    %144 = vmatprep.subr.mxu0 0.0
    %145 = vmatpush1.msra.mxu0 0.0
    %146 = vmatprep.subr.mxu0 0.0
    %147 = vmatpush1.msra.mxu0 0.0
    %148 = vmatprep.subr.mxu0 0.0
    %149 = vmatpush1.msra.mxu0 0.0
    %150 = vmatprep.subr.mxu0 0.0
    %151 = vmatpush1.msra.mxu0 0.0
    %152 = vmatprep.subr.mxu0 0.0
    %153 = vmatpush1.msra.mxu0 0.0
    %154 = vmatprep.subr.mxu0 0.0
    %155 = vmatpush1.msra.mxu0 0.0
    %156 = vmatprep.subr.mxu0 0.0
    %157 = vmatpush1.msra.mxu0 0.0
    %158 = vmatprep.subr.mxu0 0.0
    %159 = vmatpush1.msra.mxu0 0.0
    %160 = vmatprep.subr.mxu0 0.0
    %161 = vmatpush1.msra.mxu0 0.0
    %162 = vmatprep.subr.mxu0 0.0
    %163 = vmatpush1.msra.mxu0 0.0
    %164 = vmatprep.subr.mxu0 0.0
    %165 = vmatpush1.msra.mxu0 0.0
    %166 = vmatprep.subr.mxu0 0.0
    %167 = vmatpush1.msra.mxu0 0.0
    %168 = vmatprep.subr.mxu0 0.0
    %169 = vmatpush1.msra.mxu0 0.0
    %170 = vmatprep.subr.mxu0 0.0
    %171 = vmatpush1.msra.mxu0 0.0
    %172 = vmatprep.subr.mxu0 0.0
    %173 = vmatpush1.msra.mxu0 0.0
    %174 = vmatprep.subr.mxu0 0.0
    %175 = vmatpush1.msra.mxu0 0.0
    %176 = vmatprep.subr.mxu0 0.0
    %177 = vmatpush1.msra.mxu0 0.0
    %178 = vmatprep.subr.mxu0 0.0
    %179 = vmatpush1.msra.mxu0 0.0
    %180 = vmatprep.subr.mxu0 0.0
    %181 = vmatpush1.msra.mxu0 0.0
    %182 = vmatprep.subr.mxu0 0.0
    %183 = vmatpush1.msra.mxu0 0.0
    %184 = vmatprep.mubr.f32.mxu0 0.0
    %185 = vmatmul.mubr.f32.gmra.mrb[0].mxu0 %v28
    %v186 = vpop.f32.mrb[0].mxu0
    %v187 = vadd.f32 0.0, %v186
    %v188 = vpop.f32.mrb[0].mxu0
    %189 = vdwg.mxu0
    %s190 = scalar_lea.vmem [#allocation2], 8
    %191 = vst.msk [vmem:[%s190] sm:$0xff] %vm100, %v187
    %v192 = vld [vmem:[%s113] sm:$0xff]
    %v193 = vld [vmem:[%s113 + $0x8] sm:$0xff]
    %v194 = vmul.f32 %v192, 0.25
    %v195 = vmul.f32 %v193, 0.25
    %s196 = scalar_lea.vmem %s1, 64
    %v197 = vld [vmem:[%s196] sm:$0xff]
    %v198 = vld [vmem:[%s196 + $0x8] sm:$0xff]
    %v199 = vmul.f32 %v197, 0.5
    %v200 = vmul.f32 %v198, 0.5
    %v201 = vadd.f32 %v194, %v199
    %v202 = vadd.f32 %v195, %v200
    %s203 = scalar_lea.vmem %s1, 80
    %v204 = vld [vmem:[%s203] sm:$0xff]
    %v205 = vld [vmem:[%s203 + $0x8] sm:$0xff]
    %v206 = vmul.f32 %v204, 0.25
    %v207 = vmul.f32 %v205, 0.25
    %v208 = vadd.f32 %v201, %v206
    %v209 = vadd.f32 %v202, %v207
    %210 = vmatprep.subr.mxu0 0.0
    %211 = vmatpush1.msra.mxu0 %v208
    %212 = vmatprep.subr.mxu0 0.0
    %213 = vmatpush1.msra.mxu0 %v209
    %214 = vmatprep.subr.mxu0 0.0
    %215 = vmatpush1.msra.mxu0 0.0
    %216 = vmatprep.subr.mxu0 0.0
    %217 = vmatpush1.msra.mxu0 0.0
    %218 = vmatprep.subr.mxu0 0.0
    %219 = vmatpush1.msra.mxu0 0.0
    %220 = vmatprep.subr.mxu0 0.0
    %221 = vmatpush1.msra.mxu0 0.0
    %222 = vmatprep.subr.mxu0 0.0
    %223 = vmatpush1.msra.mxu0 0.0
    %224 = vmatprep.subr.mxu0 0.0
    %225 = vmatpush1.msra.mxu0 0.0
    %226 = vmatprep.subr.mxu0 0.0
    %227 = vmatpush1.msra.mxu0 0.0
    %228 = vmatprep.subr.mxu0 0.0
    %229 = vmatpush1.msra.mxu0 0.0
    %230 = vmatprep.subr.mxu0 0.0
    %231 = vmatpush1.msra.mxu0 0.0
    %232 = vmatprep.subr.mxu0 0.0
    %233 = vmatpush1.msra.mxu0 0.0
    %234 = vmatprep.subr.mxu0 0.0
    %235 = vmatpush1.msra.mxu0 0.0
    %236 = vmatprep.subr.mxu0 0.0
    %237 = vmatpush1.msra.mxu0 0.0
    %238 = vmatprep.subr.mxu0 0.0
    %239 = vmatpush1.msra.mxu0 0.0
    %240 = vmatprep.subr.mxu0 0.0
    %241 = vmatpush1.msra.mxu0 0.0
    %242 = vmatprep.subr.mxu0 0.0
    %243 = vmatpush1.msra.mxu0 0.0
    %244 = vmatprep.subr.mxu0 0.0
    %245 = vmatpush1.msra.mxu0 0.0
    %246 = vmatprep.subr.mxu0 0.0
    %247 = vmatpush1.msra.mxu0 0.0
    %248 = vmatprep.subr.mxu0 0.0
    %249 = vmatpush1.msra.mxu0 0.0
    %250 = vmatprep.subr.mxu0 0.0
    %251 = vmatpush1.msra.mxu0 0.0
    %252 = vmatprep.subr.mxu0 0.0
    %253 = vmatpush1.msra.mxu0 0.0
    %254 = vmatprep.subr.mxu0 0.0
    %255 = vmatpush1.msra.mxu0 0.0
    %256 = vmatprep.subr.mxu0 0.0
    %257 = vmatpush1.msra.mxu0 0.0
    %258 = vmatprep.subr.mxu0 0.0
    %259 = vmatpush1.msra.mxu0 0.0
    %260 = vmatprep.subr.mxu0 0.0
    %261 = vmatpush1.msra.mxu0 0.0
    %262 = vmatprep.subr.mxu0 0.0
    %263 = vmatpush1.msra.mxu0 0.0
    %264 = vmatprep.subr.mxu0 0.0
    %265 = vmatpush1.msra.mxu0 0.0
    %266 = vmatprep.subr.mxu0 0.0
    %267 = vmatpush1.msra.mxu0 0.0
    %268 = vmatprep.subr.mxu0 0.0
    %269 = vmatpush1.msra.mxu0 0.0
    %270 = vmatprep.subr.mxu0 0.0
    %271 = vmatpush1.msra.mxu0 0.0
    %272 = vmatprep.subr.mxu0 0.0
    %273 = vmatpush1.msra.mxu0 0.0
    %274 = vmatprep.mubr.f32.mxu0 0.0
    %275 = vmatmul.mubr.f32.gmra.mrb[0].mxu0 %v28
    %v276 = vpop.f32.mrb[0].mxu0
    %v277 = vadd.f32 0.0, %v276
    %v278 = vpop.f32.mrb[0].mxu0
    %279 = vdwg.mxu0
    %s280 = scalar_lea.vmem [#allocation2], 16
    %281 = vst.msk [vmem:[%s280] sm:$0xff] %vm100, %v277
    %v282 = vld [vmem:[%s203] sm:$0xff]
    %v283 = vld [vmem:[%s203 + $0x8] sm:$0xff]
    %v284 = vmul.f32 %v282, 0.25
    %v285 = vmul.f32 %v283, 0.25
    %s286 = scalar_lea.vmem %s1, 96
    %v287 = vld [vmem:[%s286] sm:$0xff]
    %v288 = vld [vmem:[%s286 + $0x8] sm:$0xff]
    %v289 = vmul.f32 %v287, 0.5
    %v290 = vmul.f32 %v288, 0.5
    %v291 = vadd.f32 %v284, %v289
    %v292 = vadd.f32 %v285, %v290
    %s293 = scalar_lea.vmem %s1, 112
    %v294 = vld [vmem:[%s293] sm:$0xff]
    %v295 = vld [vmem:[%s293 + $0x8] sm:$0xff]
    %v296 = vmul.f32 %v294, 0.25
    %v297 = vmul.f32 %v295, 0.25
    %v298 = vadd.f32 %v291, %v296
    %v299 = vadd.f32 %v292, %v297
    %300 = vmatprep.subr.mxu0 0.0
    %301 = vmatpush1.msra.mxu0 %v298
    %302 = vmatprep.subr.mxu0 0.0
    %303 = vmatpush1.msra.mxu0 %v299
    %304 = vmatprep.subr.mxu0 0.0
    %305 = vmatpush1.msra.mxu0 0.0
    %306 = vmatprep.subr.mxu0 0.0
    %307 = vmatpush1.msra.mxu0 0.0
    %308 = vmatprep.subr.mxu0 0.0
    %309 = vmatpush1.msra.mxu0 0.0
    %310 = vmatprep.subr.mxu0 0.0
    %311 = vmatpush1.msra.mxu0 0.0
    %312 = vmatprep.subr.mxu0 0.0
    %313 = vmatpush1.msra.mxu0 0.0
    %314 = vmatprep.subr.mxu0 0.0
    %315 = vmatpush1.msra.mxu0 0.0
    %316 = vmatprep.subr.mxu0 0.0
    %317 = vmatpush1.msra.mxu0 0.0
    %318 = vmatprep.subr.mxu0 0.0
    %319 = vmatpush1.msra.mxu0 0.0
    %320 = vmatprep.subr.mxu0 0.0
    %321 = vmatpush1.msra.mxu0 0.0
    %322 = vmatprep.subr.mxu0 0.0
    %323 = vmatpush1.msra.mxu0 0.0
    %324 = vmatprep.subr.mxu0 0.0
    %325 = vmatpush1.msra.mxu0 0.0
    %326 = vmatprep.subr.mxu0 0.0
    %327 = vmatpush1.msra.mxu0 0.0
    %328 = vmatprep.subr.mxu0 0.0
    %329 = vmatpush1.msra.mxu0 0.0
    %330 = vmatprep.subr.mxu0 0.0
    %331 = vmatpush1.msra.mxu0 0.0
    %332 = vmatprep.subr.mxu0 0.0
    %333 = vmatpush1.msra.mxu0 0.0
    %334 = vmatprep.subr.mxu0 0.0
    %335 = vmatpush1.msra.mxu0 0.0
    %336 = vmatprep.subr.mxu0 0.0
    %337 = vmatpush1.msra.mxu0 0.0
    %338 = vmatprep.subr.mxu0 0.0
    %339 = vmatpush1.msra.mxu0 0.0
    %340 = vmatprep.subr.mxu0 0.0
    %341 = vmatpush1.msra.mxu0 0.0
    %342 = vmatprep.subr.mxu0 0.0
    %343 = vmatpush1.msra.mxu0 0.0
    %344 = vmatprep.subr.mxu0 0.0
    %345 = vmatpush1.msra.mxu0 0.0
    %346 = vmatprep.subr.mxu0 0.0
    %347 = vmatpush1.msra.mxu0 0.0
    %348 = vmatprep.subr.mxu0 0.0
    %349 = vmatpush1.msra.mxu0 0.0
    %350 = vmatprep.subr.mxu0 0.0
    %351 = vmatpush1.msra.mxu0 0.0
    %352 = vmatprep.subr.mxu0 0.0
    %353 = vmatpush1.msra.mxu0 0.0
    %354 = vmatprep.subr.mxu0 0.0
    %355 = vmatpush1.msra.mxu0 0.0
    %356 = vmatprep.subr.mxu0 0.0
    %357 = vmatpush1.msra.mxu0 0.0
    %358 = vmatprep.subr.mxu0 0.0
    %359 = vmatpush1.msra.mxu0 0.0
    %360 = vmatprep.subr.mxu0 0.0
    %361 = vmatpush1.msra.mxu0 0.0
    %362 = vmatprep.subr.mxu0 0.0
    %363 = vmatpush1.msra.mxu0 0.0
    %364 = vmatprep.mubr.f32.mxu0 0.0
    %365 = vmatmul.mubr.f32.gmra.mrb[0].mxu0 %v28
    %v366 = vpop.f32.mrb[0].mxu0
    %v367 = vadd.f32 0.0, %v366
    %v368 = vpop.f32.mrb[0].mxu0
    %369 = vdwg.mxu0
    %s370 = scalar_lea.vmem [#allocation2], 24
    %371 = vst.msk [vmem:[%s370] sm:$0xff] %vm100, %v367
    %v372 = vld [vmem:[%s293] sm:$0xff]
    %v373 = vld [vmem:[%s293 + $0x8] sm:$0xff]
    %v374 = vmul.f32 %v372, 0.25
    %v375 = vmul.f32 %v373, 0.25
    %s376 = scalar_lea.vmem %s1, 128
    %v377 = vld [vmem:[%s376] sm:$0xff]
    %v378 = vld [vmem:[%s376 + $0x8] sm:$0xff]
    %v379 = vmul.f32 %v377, 0.5
    %v380 = vmul.f32 %v378, 0.5
    %v381 = vadd.f32 %v374, %v379
    %v382 = vadd.f32 %v375, %v380
    %s383 = scalar_lea.vmem %s1, 144
    %v384 = vld [vmem:[%s383] sm:$0xff]
    %v385 = vld [vmem:[%s383 + $0x8] sm:$0xff]
    %v386 = vmul.f32 %v384, 0.25
    %v387 = vmul.f32 %v385, 0.25
    %v388 = vadd.f32 %v381, %v386
    %v389 = vadd.f32 %v382, %v387
    %390 = vmatprep.subr.mxu0 0.0
    %391 = vmatpush1.msra.mxu0 %v388
    %392 = vmatprep.subr.mxu0 0.0
    %393 = vmatpush1.msra.mxu0 %v389
    %394 = vmatprep.subr.mxu0 0.0
    %395 = vmatpush1.msra.mxu0 0.0
    %396 = vmatprep.subr.mxu0 0.0
    %397 = vmatpush1.msra.mxu0 0.0
    %398 = vmatprep.subr.mxu0 0.0
    %399 = vmatpush1.msra.mxu0 0.0
    %400 = vmatprep.subr.mxu0 0.0
    %401 = vmatpush1.msra.mxu0 0.0
    %402 = vmatprep.subr.mxu0 0.0
    %403 = vmatpush1.msra.mxu0 0.0
    %404 = vmatprep.subr.mxu0 0.0
    %405 = vmatpush1.msra.mxu0 0.0
    %406 = vmatprep.subr.mxu0 0.0
    %407 = vmatpush1.msra.mxu0 0.0
    %408 = vmatprep.subr.mxu0 0.0
    %409 = vmatpush1.msra.mxu0 0.0
    %410 = vmatprep.subr.mxu0 0.0
    %411 = vmatpush1.msra.mxu0 0.0
    %412 = vmatprep.subr.mxu0 0.0
    %413 = vmatpush1.msra.mxu0 0.0
    %414 = vmatprep.subr.mxu0 0.0
    %415 = vmatpush1.msra.mxu0 0.0
    %416 = vmatprep.subr.mxu0 0.0
    %417 = vmatpush1.msra.mxu0 0.0
    %418 = vmatprep.subr.mxu0 0.0
    %419 = vmatpush1.msra.mxu0 0.0
    %420 = vmatprep.subr.mxu0 0.0
    %421 = vmatpush1.msra.mxu0 0.0
    %422 = vmatprep.subr.mxu0 0.0
    %423 = vmatpush1.msra.mxu0 0.0
    %424 = vmatprep.subr.mxu0 0.0
    %425 = vmatpush1.msra.mxu0 0.0
    %426 = vmatprep.subr.mxu0 0.0
    %427 = vmatpush1.msra.mxu0 0.0
    %428 = vmatprep.subr.mxu0 0.0
    %429 = vmatpush1.msra.mxu0 0.0
    %430 = vmatprep.subr.mxu0 0.0
    %431 = vmatpush1.msra.mxu0 0.0
    %432 = vmatprep.subr.mxu0 0.0
    %433 = vmatpush1.msra.mxu0 0.0
    %434 = vmatprep.subr.mxu0 0.0
    %435 = vmatpush1.msra.mxu0 0.0
    %436 = vmatprep.subr.mxu0 0.0
    %437 = vmatpush1.msra.mxu0 0.0
    %438 = vmatprep.subr.mxu0 0.0
    %439 = vmatpush1.msra.mxu0 0.0
    %440 = vmatprep.subr.mxu0 0.0
    %441 = vmatpush1.msra.mxu0 0.0
    %442 = vmatprep.subr.mxu0 0.0
    %443 = vmatpush1.msra.mxu0 0.0
    %444 = vmatprep.subr.mxu0 0.0
    %445 = vmatpush1.msra.mxu0 0.0
    %446 = vmatprep.subr.mxu0 0.0
    %447 = vmatpush1.msra.mxu0 0.0
    %448 = vmatprep.subr.mxu0 0.0
    %449 = vmatpush1.msra.mxu0 0.0
    %450 = vmatprep.subr.mxu0 0.0
    %451 = vmatpush1.msra.mxu0 0.0
    %452 = vmatprep.subr.mxu0 0.0
    %453 = vmatpush1.msra.mxu0 0.0
    %454 = vmatprep.mubr.f32.mxu0 0.0
    %455 = vmatmul.mubr.f32.gmra.mrb[0].mxu0 %v28
    %v456 = vpop.f32.mrb[0].mxu0
    %v457 = vadd.f32 0.0, %v456
    %v458 = vpop.f32.mrb[0].mxu0
    %459 = vdwg.mxu0
    %s460 = scalar_lea.vmem [#allocation2], 32
    %461 = vst.msk [vmem:[%s460] sm:$0xff] %vm100, %v457
    %v462 = vld [vmem:[%s383] sm:$0xff]
    %v463 = vld [vmem:[%s383 + $0x8] sm:$0xff]
    %v464 = vmul.f32 %v462, 0.25
    %v465 = vmul.f32 %v463, 0.25
    %s466 = scalar_lea.vmem %s1, 160
    %v467 = vld [vmem:[%s466] sm:$0xff]
    %v468 = vld [vmem:[%s466 + $0x8] sm:$0xff]
    %v469 = vmul.f32 %v467, 0.5
    %v470 = vmul.f32 %v468, 0.5
    %v471 = vadd.f32 %v464, %v469
    %v472 = vadd.f32 %v465, %v470
    %s473 = scalar_lea.vmem %s1, 176
    %v474 = vld [vmem:[%s473] sm:$0xff]
    %v475 = vld [vmem:[%s473 + $0x8] sm:$0xff]
    %v476 = vmul.f32 %v474, 0.25
    %v477 = vmul.f32 %v475, 0.25
    %v478 = vadd.f32 %v471, %v476
    %v479 = vadd.f32 %v472, %v477
    %480 = vmatprep.subr.mxu0 0.0
    %481 = vmatpush1.msra.mxu0 %v478
    %482 = vmatprep.subr.mxu0 0.0
    %483 = vmatpush1.msra.mxu0 %v479
    %484 = vmatprep.subr.mxu0 0.0
    %485 = vmatpush1.msra.mxu0 0.0
    %486 = vmatprep.subr.mxu0 0.0
    %487 = vmatpush1.msra.mxu0 0.0
    %488 = vmatprep.subr.mxu0 0.0
    %489 = vmatpush1.msra.mxu0 0.0
    %490 = vmatprep.subr.mxu0 0.0
    %491 = vmatpush1.msra.mxu0 0.0
    %492 = vmatprep.subr.mxu0 0.0
    %493 = vmatpush1.msra.mxu0 0.0
    %494 = vmatprep.subr.mxu0 0.0
    %495 = vmatpush1.msra.mxu0 0.0
    %496 = vmatprep.subr.mxu0 0.0
    %497 = vmatpush1.msra.mxu0 0.0
    %498 = vmatprep.subr.mxu0 0.0
    %499 = vmatpush1.msra.mxu0 0.0
    %500 = vmatprep.subr.mxu0 0.0
    %501 = vmatpush1.msra.mxu0 0.0
    %502 = vmatprep.subr.mxu0 0.0
    %503 = vmatpush1.msra.mxu0 0.0
    %504 = vmatprep.subr.mxu0 0.0
    %505 = vmatpush1.msra.mxu0 0.0
    %506 = vmatprep.subr.mxu0 0.0
    %507 = vmatpush1.msra.mxu0 0.0
    %508 = vmatprep.subr.mxu0 0.0
    %509 = vmatpush1.msra.mxu0 0.0
    %510 = vmatprep.subr.mxu0 0.0
    %511 = vmatpush1.msra.mxu0 0.0
    %512 = vmatprep.subr.mxu0 0.0
    %513 = vmatpush1.msra.mxu0 0.0
    %514 = vmatprep.subr.mxu0 0.0
    %515 = vmatpush1.msra.mxu0 0.0
    %516 = vmatprep.subr.mxu0 0.0
    %517 = vmatpush1.msra.mxu0 0.0
    %518 = vmatprep.subr.mxu0 0.0
    %519 = vmatpush1.msra.mxu0 0.0
    %520 = vmatprep.subr.mxu0 0.0
    %521 = vmatpush1.msra.mxu0 0.0
    %522 = vmatprep.subr.mxu0 0.0
    %523 = vmatpush1.msra.mxu0 0.0
    %524 = vmatprep.subr.mxu0 0.0
    %525 = vmatpush1.msra.mxu0 0.0
    %526 = vmatprep.subr.mxu0 0.0
    %527 = vmatpush1.msra.mxu0 0.0
    %528 = vmatprep.subr.mxu0 0.0
    %529 = vmatpush1.msra.mxu0 0.0
    %530 = vmatprep.subr.mxu0 0.0
    %531 = vmatpush1.msra.mxu0 0.0
    %532 = vmatprep.subr.mxu0 0.0
    %533 = vmatpush1.msra.mxu0 0.0
    %534 = vmatprep.subr.mxu0 0.0
    %535 = vmatpush1.msra.mxu0 0.0
    %536 = vmatprep.subr.mxu0 0.0
    %537 = vmatpush1.msra.mxu0 0.0
    %538 = vmatprep.subr.mxu0 0.0
    %539 = vmatpush1.msra.mxu0 0.0
    %540 = vmatprep.subr.mxu0 0.0
    %541 = vmatpush1.msra.mxu0 0.0
    %542 = vmatprep.subr.mxu0 0.0
    %543 = vmatpush1.msra.mxu0 0.0
    %544 = vmatprep.mubr.f32.mxu0 0.0
    %545 = vmatmul.mubr.f32.gmra.mrb[0].mxu0 %v28
    %v546 = vpop.f32.mrb[0].mxu0
    %v547 = vadd.f32 0.0, %v546
    %v548 = vpop.f32.mrb[0].mxu0
    %549 = vdwg.mxu0
    %s550 = scalar_lea.vmem [#allocation2], 40
    %551 = vst.msk [vmem:[%s550] sm:$0xff] %vm100, %v547
    %v552 = vld [vmem:[%s473] sm:$0xff]
    %v553 = vld [vmem:[%s473 + $0x8] sm:$0xff]
    %v554 = vmul.f32 %v552, 0.25
    %v555 = vmul.f32 %v553, 0.25
    %s556 = scalar_lea.vmem %s1, 192
    %v557 = vld [vmem:[%s556] sm:$0xff]
    %v558 = vld [vmem:[%s556 + $0x8] sm:$0xff]
    %v559 = vmul.f32 %v557, 0.5
    %v560 = vmul.f32 %v558, 0.5
    %v561 = vadd.f32 %v554, %v559
    %v562 = vadd.f32 %v555, %v560
    %s563 = scalar_lea.vmem %s1, 208
    %v564 = vld [vmem:[%s563] sm:$0xff]
    %v565 = vld [vmem:[%s563 + $0x8] sm:$0xff]
    %v566 = vmul.f32 %v564, 0.25
    %v567 = vmul.f32 %v565, 0.25
    %v568 = vadd.f32 %v561, %v566
    %v569 = vadd.f32 %v562, %v567
    %570 = vmatprep.subr.mxu0 0.0
    %571 = vmatpush1.msra.mxu0 %v568
    %572 = vmatprep.subr.mxu0 0.0
    %573 = vmatpush1.msra.mxu0 %v569
    %574 = vmatprep.subr.mxu0 0.0
    %575 = vmatpush1.msra.mxu0 0.0
    %576 = vmatprep.subr.mxu0 0.0
    %577 = vmatpush1.msra.mxu0 0.0
    %578 = vmatprep.subr.mxu0 0.0
    %579 = vmatpush1.msra.mxu0 0.0
    %580 = vmatprep.subr.mxu0 0.0
    %581 = vmatpush1.msra.mxu0 0.0
    %582 = vmatprep.subr.mxu0 0.0
    %583 = vmatpush1.msra.mxu0 0.0
    %584 = vmatprep.subr.mxu0 0.0
    %585 = vmatpush1.msra.mxu0 0.0
    %586 = vmatprep.subr.mxu0 0.0
    %587 = vmatpush1.msra.mxu0 0.0
    %588 = vmatprep.subr.mxu0 0.0
    %589 = vmatpush1.msra.mxu0 0.0
    %590 = vmatprep.subr.mxu0 0.0
    %591 = vmatpush1.msra.mxu0 0.0
    %592 = vmatprep.subr.mxu0 0.0
    %593 = vmatpush1.msra.mxu0 0.0
    %594 = vmatprep.subr.mxu0 0.0
    %595 = vmatpush1.msra.mxu0 0.0
    %596 = vmatprep.subr.mxu0 0.0
    %597 = vmatpush1.msra.mxu0 0.0
    %598 = vmatprep.subr.mxu0 0.0
    %599 = vmatpush1.msra.mxu0 0.0
    %600 = vmatprep.subr.mxu0 0.0
    %601 = vmatpush1.msra.mxu0 0.0
    %602 = vmatprep.subr.mxu0 0.0
    %603 = vmatpush1.msra.mxu0 0.0
    %604 = vmatprep.subr.mxu0 0.0
    %605 = vmatpush1.msra.mxu0 0.0
    %606 = vmatprep.subr.mxu0 0.0
    %607 = vmatpush1.msra.mxu0 0.0
    %608 = vmatprep.subr.mxu0 0.0
    %609 = vmatpush1.msra.mxu0 0.0
    %610 = vmatprep.subr.mxu0 0.0
    %611 = vmatpush1.msra.mxu0 0.0
    %612 = vmatprep.subr.mxu0 0.0
    %613 = vmatpush1.msra.mxu0 0.0
    %614 = vmatprep.subr.mxu0 0.0
    %615 = vmatpush1.msra.mxu0 0.0
    %616 = vmatprep.subr.mxu0 0.0
    %617 = vmatpush1.msra.mxu0 0.0
    %618 = vmatprep.subr.mxu0 0.0
    %619 = vmatpush1.msra.mxu0 0.0
    %620 = vmatprep.subr.mxu0 0.0
    %621 = vmatpush1.msra.mxu0 0.0
    %622 = vmatprep.subr.mxu0 0.0
    %623 = vmatpush1.msra.mxu0 0.0
    %624 = vmatprep.subr.mxu0 0.0
    %625 = vmatpush1.msra.mxu0 0.0
    %626 = vmatprep.subr.mxu0 0.0
    %627 = vmatpush1.msra.mxu0 0.0
    %628 = vmatprep.subr.mxu0 0.0
    %629 = vmatpush1.msra.mxu0 0.0
    %630 = vmatprep.subr.mxu0 0.0
    %631 = vmatpush1.msra.mxu0 0.0
    %632 = vmatprep.subr.mxu0 0.0
    %633 = vmatpush1.msra.mxu0 0.0
    %634 = vmatprep.mubr.f32.mxu0 0.0
    %635 = vmatmul.mubr.f32.gmra.mrb[0].mxu0 %v28
    %v636 = vpop.f32.mrb[0].mxu0
    %v637 = vadd.f32 0.0, %v636
    %v638 = vpop.f32.mrb[0].mxu0
    %639 = vdwg.mxu0
    %s640 = scalar_lea.vmem [#allocation2], 48
    %641 = vst.msk [vmem:[%s640] sm:$0xff] %vm100, %v637
    %v642 = vld [vmem:[%s563] sm:$0xff]
    %v643 = vld [vmem:[%s563 + $0x8] sm:$0xff]
    %v644 = vmul.f32 %v642, 0.25
    %v645 = vmul.f32 %v643, 0.25
    %s646 = scalar_lea.vmem %s1, 224
    %v647 = vld [vmem:[%s646] sm:$0xff]
    %v648 = vld [vmem:[%s646 + $0x8] sm:$0xff]
    %v649 = vmul.f32 %v647, 0.5
    %v650 = vmul.f32 %v648, 0.5
    %v651 = vadd.f32 %v644, %v649
    %v652 = vadd.f32 %v645, %v650
    %s653 = scalar_lea.vmem %s1, 240
    %v654 = vld [vmem:[%s653] sm:$0xff]
    %v655 = vld [vmem:[%s653 + $0x8] sm:$0xff]
    %v656 = vmul.f32 %v654, 0.25
    %v657 = vmul.f32 %v655, 0.25
    %v658 = vadd.f32 %v651, %v656
    %v659 = vadd.f32 %v652, %v657
    %660 = vmatprep.subr.mxu0 0.0
    %661 = vmatpush1.msra.mxu0 %v658
    %662 = vmatprep.subr.mxu0 0.0
    %663 = vmatpush1.msra.mxu0 %v659
    %664 = vmatprep.subr.mxu0 0.0
    %665 = vmatpush1.msra.mxu0 0.0
    %666 = vmatprep.subr.mxu0 0.0
    %667 = vmatpush1.msra.mxu0 0.0
    %668 = vmatprep.subr.mxu0 0.0
    %669 = vmatpush1.msra.mxu0 0.0
    %670 = vmatprep.subr.mxu0 0.0
    %671 = vmatpush1.msra.mxu0 0.0
    %672 = vmatprep.subr.mxu0 0.0
    %673 = vmatpush1.msra.mxu0 0.0
    %674 = vmatprep.subr.mxu0 0.0
    %675 = vmatpush1.msra.mxu0 0.0
    %676 = vmatprep.subr.mxu0 0.0
    %677 = vmatpush1.msra.mxu0 0.0
    %678 = vmatprep.subr.mxu0 0.0
    %679 = vmatpush1.msra.mxu0 0.0
    %680 = vmatprep.subr.mxu0 0.0
    %681 = vmatpush1.msra.mxu0 0.0
    %682 = vmatprep.subr.mxu0 0.0
    %683 = vmatpush1.msra.mxu0 0.0
    %684 = vmatprep.subr.mxu0 0.0
    %685 = vmatpush1.msra.mxu0 0.0
    %686 = vmatprep.subr.mxu0 0.0
    %687 = vmatpush1.msra.mxu0 0.0
    %688 = vmatprep.subr.mxu0 0.0
    %689 = vmatpush1.msra.mxu0 0.0
    %690 = vmatprep.subr.mxu0 0.0
    %691 = vmatpush1.msra.mxu0 0.0
    %692 = vmatprep.subr.mxu0 0.0
    %693 = vmatpush1.msra.mxu0 0.0
    %694 = vmatprep.subr.mxu0 0.0
    %695 = vmatpush1.msra.mxu0 0.0
    %696 = vmatprep.subr.mxu0 0.0
    %697 = vmatpush1.msra.mxu0 0.0
    %698 = vmatprep.subr.mxu0 0.0
    %699 = vmatpush1.msra.mxu0 0.0
    %700 = vmatprep.subr.mxu0 0.0
    %701 = vmatpush1.msra.mxu0 0.0
    %702 = vmatprep.subr.mxu0 0.0
    %703 = vmatpush1.msra.mxu0 0.0
    %704 = vmatprep.subr.mxu0 0.0
    %705 = vmatpush1.msra.mxu0 0.0
    %706 = vmatprep.subr.mxu0 0.0
    %707 = vmatpush1.msra.mxu0 0.0
    %708 = vmatprep.subr.mxu0 0.0
    %709 = vmatpush1.msra.mxu0 0.0
    %710 = vmatprep.subr.mxu0 0.0
    %711 = vmatpush1.msra.mxu0 0.0
    %712 = vmatprep.subr.mxu0 0.0
    %713 = vmatpush1.msra.mxu0 0.0
    %714 = vmatprep.subr.mxu0 0.0
    %715 = vmatpush1.msra.mxu0 0.0
    %716 = vmatprep.subr.mxu0 0.0
    %717 = vmatpush1.msra.mxu0 0.0
    %718 = vmatprep.subr.mxu0 0.0
    %719 = vmatpush1.msra.mxu0 0.0
    %720 = vmatprep.subr.mxu0 0.0
    %721 = vmatpush1.msra.mxu0 0.0
    %722 = vmatprep.subr.mxu0 0.0
    %723 = vmatpush1.msra.mxu0 0.0
    %724 = vmatprep.mubr.f32.mxu0 0.0
    %725 = vmatmul.mubr.f32.gmra.mrb[0].mxu0 %v28
    %v726 = vpop.f32.mrb[0].mxu0
    %v727 = vadd.f32 0.0, %v726
    %v728 = vpop.f32.mrb[0].mxu0
    %729 = vdwg.mxu0
    %s730 = scalar_lea.vmem [#allocation2], 56
    %731 = vst.msk [vmem:[%s730] sm:$0xff] %vm100, %v727
    // Predicated region
    $region10: #{tpu_custom_call.1} parent=1 // pred_check
      _
    $region11: #{tpu_custom_call.1} parent=1 // pred_check_branch
      %733 = sbr.rel (0) target = $region13
    $region12: #{tpu_custom_call.1} parent=1 // pred_region
      %s735 = ssub.s32 1024, 1024
      %736 = vsyncadd [#allocation3], %s735
      %s737 = sshll.u32 [#allocation2], 4
      %s738 = int_to_ptr.vmem [resolvable:$true] %s737
      %743 = dma.vmem_to_hbm [thread:$0]  %s738, 1024, %s2, [#allocation3], 128, 128, 8
    $region13: #{tpu_custom_call.1} parent=1 // pred_fallthru
      _
    // Predicated region
    $region14: #{tpu_custom_call.1} parent=1 // pred_check
      _
    $region15: #{tpu_custom_call.1} parent=1 // pred_check_branch
      %745 = sbr.rel (0) target = $region17
    $region16: #{tpu_custom_call.1} parent=1 // pred_region
      %746 = dma.done [#allocation3], 1024
    $region17: #{tpu_custom_call.1} parent=1 // pred_fallthru
      _
    %747 = vsyncpa [#allocation3], 1

</llo_original>
